<compile_context>
chip_gen: v7x
topology: tpu7x:2x2x1
jax: 0.10.0
libtpu: 0.0.40
codegen_flags: <defaults>
</compile_context>

<pallas_src>
import math
import functools

import jax
import jax.numpy as jnp
from jax import lax
from jax.experimental import pallas as pl
from jax.experimental.pallas import tpu as pltpu


# ---------------------------------------------------------------------------
# helpers
# ---------------------------------------------------------------------------
def _vmem_limit_bytes():
    """Generation-aware scoped-VMEM limit (v7x has 64 MiB/TC, v5e/v6e 128 MiB)."""
    cap = 128 * 1024 * 1024
    try:
        info = pltpu.get_tpu_info()
        cap = getattr(info, "vmem_capacity_bytes", cap) or cap
    except Exception:
        pass
    if cap <= 64 * 1024 * 1024:
        return 40 * 1024 * 1024      # v7x: leave headroom inside 64 MiB/TC
    return 100 * 1024 * 1024         # v5e / v6e: 128 MiB parts


def _resident_spec(block_shape, index_map):
    """BlockSpec for a constant-index (VMEM-resident) operand: single-buffered."""
    try:
        return pl.BlockSpec(block_shape, index_map, pipeline_mode=pl.Buffered(1))
    except TypeError:                # older jax without pipeline_mode kwarg
        return pl.BlockSpec(block_shape, index_map)


# ---------------------------------------------------------------------------
# Fused kernel: per batch element, QKV projection + multi-head attention.
#   x_ref : (1, S, H)            input dtype (cast to bf16 in VMEM)
#   w_ref : (3, nH, H, d) bf16   [Wq/sqrt(d) | Wk | Wv], per-head leading dims
#   b_ref : (3, nH, 1, d) f32    matching biases (bq already scaled)
#   o_ref : (1, S, O)   f32      context, heads packed along lanes
# ---------------------------------------------------------------------------
def fused_attention_kernel(x_ref, w_ref, b_ref, o_ref, *, num_heads, head_dim):
    x = x_ref[0].astype(jnp.bfloat16)                       # (S, H) bf16 MXU operand

    for h in range(num_heads):                              # static unroll; head select
        # head selection = leading-dim ref views (free), no lane slicing
        q = (jnp.dot(x, w_ref[0, h], preferred_element_type=jnp.float32)
             + b_ref[0, h]).astype(jnp.bfloat16)            # (S, d), already *1/sqrt(d)
        k = (jnp.dot(x, w_ref[1, h], preferred_element_type=jnp.float32)
             + b_ref[1, h]).astype(jnp.bfloat16)
        v = (jnp.dot(x, w_ref[2, h], preferred_element_type=jnp.float32)
             + b_ref[2, h]).astype(jnp.bfloat16)

        # scores = q @ k^T : contract last dims of both operands (no XLU transpose)
        s = lax.dot_general(q, k, dimension_numbers=(((1,), (1,)), ((), ())),
                            preferred_element_type=jnp.float32)      # (S, S) f32

        m = jnp.max(s, axis=-1, keepdims=True)
        p = jnp.exp(s - m)                                  # unnormalized probs, f32
        l = jnp.sum(p, axis=-1, keepdims=True)              # (S, 1)

        # dropout is identity at inference
        ctx = jnp.dot(p.astype(jnp.bfloat16), v,
                      preferred_element_type=jnp.float32)   # (S, d) f32
        # fold softmax denominator into the small context (EUP reciprocal, exact)
        ctx = ctx * pl.reciprocal(l, approx=False)

        lo = h * head_dim
        # static-offset write into the resident output block; HBM writeback of the
        # full (S, O) block stays lane-dense
        o_ref[0, :, lo:lo + head_dim] = ctx.astype(o_ref.dtype)


def fused_self_attention(x, w_qkv, b_qkv, num_heads, head_dim):
    """x: (B, S, H); w_qkv: (3, nH, H, d) bf16; b_qkv: (3, nH, 1, d) f32 -> (B, S, O) f32."""
    B, S, H = x.shape
    O = num_heads * head_dim
    return pl.pallas_call(
        functools.partial(fused_attention_kernel,
                          num_heads=num_heads, head_dim=head_dim),
        grid=(B,),
        in_specs=[pl.BlockSpec((1, S, H), lambda b: (b, 0, 0)),
                  _resident_spec((3, num_heads, H, head_dim), lambda b: (0, 0, 0, 0)),
                  _resident_spec((3, num_heads, 1, head_dim), lambda b: (0, 0, 0, 0))],
        out_specs=pl.BlockSpec((1, S, O), lambda b: (b, 0, 0)),
        out_shape=jax.ShapeDtypeStruct((B, S, O), jnp.float32),
        compiler_params=pltpu.CompilerParams(
            dimension_semantics=("parallel",),
            vmem_limit_bytes=_vmem_limit_bytes()),
    )(x, w_qkv, b_qkv)


# ---------------------------------------------------------------------------
# Module wrapper
# ---------------------------------------------------------------------------
class SelfAttentionPallas:
    def __init__(self, hidden_size, num_attention_heads, output_size,
                 dropout_prob, key):
        assert output_size % num_attention_heads == 0
        self.num_heads = num_attention_heads
        self.head_dim = output_size // num_attention_heads
        self.all_head_size = output_size
        self.hidden_size = hidden_size
        self.dropout_prob = dropout_prob          # identity at inference

        # deterministic PyTorch-like nn.Linear init: U(-1/sqrt(H), 1/sqrt(H))
        bound = 1.0 / math.sqrt(hidden_size)
        ks = jax.random.split(key, 6)
        u = lambda k, shp: jax.random.uniform(k, shp, jnp.float32, -bound, bound)
        # unscaled f32 parameters (kept for the pure-JAX reference)
        self.wq = u(ks[0], (hidden_size, output_size))   # stored (H, O): y = x @ W
        self.wk = u(ks[1], (hidden_size, output_size))
        self.wv = u(ks[2], (hidden_size, output_size))
        self.bq = u(ks[3], (1, output_size))
        self.bk = u(ks[4], (1, output_size))
        self.bv = u(ks[5], (1, output_size))

        # fused kernel parameters: per-head layout (3, nH, H, d) so head selection is
        # a leading-dim view in-kernel; 1/sqrt(d) folded into the query block; weights
        # cast to bf16 (MXU operand dtype), biases kept f32.
        nH, d = self.num_heads, self.head_dim
        scale = 1.0 / math.sqrt(d)
        per_head_w = lambda w: jnp.transpose(w.reshape(hidden_size, nH, d), (1, 0, 2))
        per_head_b = lambda b: jnp.transpose(b.reshape(1, nH, d), (1, 0, 2))
        self.w_qkv = jnp.stack(
            [per_head_w(self.wq * scale), per_head_w(self.wk), per_head_w(self.wv)],
            axis=0).astype(jnp.bfloat16)                       # (3, nH, H, d)
        self.b_qkv = jnp.stack(
            [per_head_b(self.bq * scale), per_head_b(self.bk), per_head_b(self.bv)],
            axis=0)                                            # (3, nH, 1, d) f32

    def __call__(self, hidden_states):
        # single fused pallas_call; no intermediate tensors touch HBM
        return fused_self_attention(hidden_states, self.w_qkv, self.b_qkv,
                                    self.num_heads, self.head_dim)


# ---------------------------------------------------------------------------
def _reference(module, x):
    """Pure-JAX f32 reference, faithful to the PyTorch module."""
    B, S, H = x.shape
    nH, d = module.num_heads, module.head_dim
    q = x @ module.wq + module.bq[0]
    k = x @ module.wk + module.bk[0]
    v = x @ module.wv + module.bv[0]
    r = lambda t: jnp.transpose(t.reshape(B, S, nH, d), (0, 2, 1, 3))
    q, k, v = r(q), r(k), r(v)
    s = jnp.einsum("bhqd,bhkd->bhqk", q, k) / math.sqrt(d)
    p = jax.nn.softmax(s, axis=-1)
    c = jnp.einsum("bhqk,bhkd->bhqd", p, v)
    return jnp.transpose(c, (0, 2, 1, 3)).reshape(B, S, nH * d)


if __name__ == "__main__":
    B, S = 2, 8
    hidden_size = 32
    num_heads = 4
    output_size = 32
    dropout_prob = 0.1   # identity at inference

    key = jax.random.PRNGKey(0)
    kx, kp = jax.random.split(key)
    x = jax.random.normal(kx, (B, S, hidden_size), dtype=jnp.float32)

    module = SelfAttentionPallas(hidden_size, num_heads, output_size,
                                 dropout_prob, kp)

    out = jax.block_until_ready(module(x))

    ref = _reference(module, x)
    assert out.shape == (B, S, output_size)
    # bf16 MXU operands -> loosened tolerance vs f32 reference
    assert jnp.allclose(out, ref, atol=5e-2, rtol=5e-2), (
        "mismatch vs reference: max abs err "
        f"{jnp.max(jnp.abs(out - ref))}")

    print("KERNEL_OK")
</pallas_src>

<mosaic_0001>
module attributes {stable_mosaic.version = 11 : i64} {
  func.func @fused_attention_kernel(%arg0: i32, %arg1: memref<1x8x32xf32, #tpu.memory_space<vmem>>, %arg2: memref<3x4x32x8xbf16, #tpu.memory_space<vmem>>, %arg3: memref<3x4x1x8xf32, #tpu.memory_space<vmem>>, %arg4: memref<1x8x32xf32, #tpu.memory_space<vmem>>) attributes {dimension_semantics = [#tpu.dimension_semantics<parallel>], iteration_bounds = array<i64: 2>, scalar_prefetch = 0 : i64, scratch_operands = 0 : i64, tpu.core_type = #tpu.core_type<tc>, window_params = [{transform_indices = @transform_0, window_bounds = array<i64: 1, 8, 32>}, {pipeline_mode = #tpu.pipeline_mode<synchronous>, transform_indices = @transform_1, window_bounds = array<i64: 3, 4, 32, 8>}, {pipeline_mode = #tpu.pipeline_mode<synchronous>, transform_indices = @transform_2, window_bounds = array<i64: 3, 4, 1, 8>}, {transform_indices = @transform_3, window_bounds = array<i64: 1, 8, 32>}]} {
    %c0 = arith.constant 0 : index
    %c0_0 = arith.constant 0 : index
    %c0_1 = arith.constant 0 : index
    %0 = vector.load %arg1[%c0, %c0_0, %c0_1] : memref<1x8x32xf32, #tpu.memory_space<vmem>>, vector<1x8x32xf32>
    %1 = vector.shape_cast %0 : vector<1x8x32xf32> to vector<8x32xf32>
    %2 = arith.truncf %1 : vector<8x32xf32> to vector<8x32xbf16>
    %c0_2 = arith.constant 0 : index
    %c0_3 = arith.constant 0 : index
    %c0_4 = arith.constant 0 : index
    %c0_5 = arith.constant 0 : index
    %3 = vector.load %arg2[%c0_2, %c0_3, %c0_4, %c0_5] : memref<3x4x32x8xbf16, #tpu.memory_space<vmem>>, vector<1x1x32x8xbf16>
    %4 = vector.shape_cast %3 : vector<1x1x32x8xbf16> to vector<32x8xbf16>
    %cst = arith.constant dense<0.000000e+00> : vector<8x8xf32>
    %5 = tpu.matmul %2, %4, %cst {dimension_numbers = #tpu.dot_dimension_numbers<[1], [0], [0], [1], [0, 0, 1, 1], [], []>} : vector<8x32xbf16>, vector<32x8xbf16>, vector<8x8xf32> -> vector<8x8xf32>
    %c0_6 = arith.constant 0 : index
    %c0_7 = arith.constant 0 : index
    %c0_8 = arith.constant 0 : index
    %c0_9 = arith.constant 0 : index
    %6 = vector.load %arg3[%c0_6, %c0_7, %c0_8, %c0_9] : memref<3x4x1x8xf32, #tpu.memory_space<vmem>>, vector<1x1x1x8xf32>
    %7 = vector.shape_cast %6 : vector<1x1x1x8xf32> to vector<1x8xf32>
    %8 = vector.broadcast %7 : vector<1x8xf32> to vector<8x8xf32>
    %9 = arith.addf %5, %8 : vector<8x8xf32>
    %10 = arith.truncf %9 : vector<8x8xf32> to vector<8x8xbf16>
    %c1 = arith.constant 1 : index
    %c0_10 = arith.constant 0 : index
    %c0_11 = arith.constant 0 : index
    %c0_12 = arith.constant 0 : index
    %11 = vector.load %arg2[%c1, %c0_10, %c0_11, %c0_12] : memref<3x4x32x8xbf16, #tpu.memory_space<vmem>>, vector<1x1x32x8xbf16>
    %12 = vector.shape_cast %11 : vector<1x1x32x8xbf16> to vector<32x8xbf16>
    %cst_13 = arith.constant dense<0.000000e+00> : vector<8x8xf32>
    %13 = tpu.matmul %2, %12, %cst_13 {dimension_numbers = #tpu.dot_dimension_numbers<[1], [0], [0], [1], [0, 0, 1, 1], [], []>} : vector<8x32xbf16>, vector<32x8xbf16>, vector<8x8xf32> -> vector<8x8xf32>
    %c1_14 = arith.constant 1 : index
    %c0_15 = arith.constant 0 : index
    %c0_16 = arith.constant 0 : index
    %c0_17 = arith.constant 0 : index
    %14 = vector.load %arg3[%c1_14, %c0_15, %c0_16, %c0_17] : memref<3x4x1x8xf32, #tpu.memory_space<vmem>>, vector<1x1x1x8xf32>
    %15 = vector.shape_cast %14 : vector<1x1x1x8xf32> to vector<1x8xf32>
    %16 = vector.broadcast %15 : vector<1x8xf32> to vector<8x8xf32>
    %17 = arith.addf %13, %16 : vector<8x8xf32>
    %18 = arith.truncf %17 : vector<8x8xf32> to vector<8x8xbf16>
    %c2 = arith.constant 2 : index
    %c0_18 = arith.constant 0 : index
    %c0_19 = arith.constant 0 : index
    %c0_20 = arith.constant 0 : index
    %19 = vector.load %arg2[%c2, %c0_18, %c0_19, %c0_20] : memref<3x4x32x8xbf16, #tpu.memory_space<vmem>>, vector<1x1x32x8xbf16>
    %20 = vector.shape_cast %19 : vector<1x1x32x8xbf16> to vector<32x8xbf16>
    %cst_21 = arith.constant dense<0.000000e+00> : vector<8x8xf32>
    %21 = tpu.matmul %2, %20, %cst_21 {dimension_numbers = #tpu.dot_dimension_numbers<[1], [0], [0], [1], [0, 0, 1, 1], [], []>} : vector<8x32xbf16>, vector<32x8xbf16>, vector<8x8xf32> -> vector<8x8xf32>
    %c2_22 = arith.constant 2 : index
    %c0_23 = arith.constant 0 : index
    %c0_24 = arith.constant 0 : index
    %c0_25 = arith.constant 0 : index
    %22 = vector.load %arg3[%c2_22, %c0_23, %c0_24, %c0_25] : memref<3x4x1x8xf32, #tpu.memory_space<vmem>>, vector<1x1x1x8xf32>
    %23 = vector.shape_cast %22 : vector<1x1x1x8xf32> to vector<1x8xf32>
    %24 = vector.broadcast %23 : vector<1x8xf32> to vector<8x8xf32>
    %25 = arith.addf %21, %24 : vector<8x8xf32>
    %26 = arith.truncf %25 : vector<8x8xf32> to vector<8x8xbf16>
    %cst_26 = arith.constant dense<0.000000e+00> : vector<8x8xf32>
    %27 = tpu.matmul %10, %18, %cst_26 {dimension_numbers = #tpu.dot_dimension_numbers<[1], [1], [0], [0], [0, 0, 1, 0], [], []>} : vector<8x8xbf16>, vector<8x8xbf16>, vector<8x8xf32> -> vector<8x8xf32>
    %cst_27 = arith.constant dense<0xFF800000> : vector<8xf32>
    %28 = vector.multi_reduction <maximumf>, %27, %cst_27 [1] : vector<8x8xf32> to vector<8xf32>
    %29 = vector.shape_cast %28 : vector<8xf32> to vector<8x1xf32>
    %30 = vector.broadcast %29 : vector<8x1xf32> to vector<8x8xf32>
    %31 = arith.subf %27, %30 : vector<8x8xf32>
    %32 = math.exp %31 : vector<8x8xf32>
    %cst_28 = arith.constant dense<0.000000e+00> : vector<8xf32>
    %33 = vector.multi_reduction <add>, %32, %cst_28 [1] : vector<8x8xf32> to vector<8xf32>
    %34 = vector.shape_cast %33 : vector<8xf32> to vector<8x1xf32>
    %35 = arith.truncf %32 : vector<8x8xf32> to vector<8x8xbf16>
    %cst_29 = arith.constant dense<0.000000e+00> : vector<8x8xf32>
    %36 = tpu.matmul %35, %26, %cst_29 {dimension_numbers = #tpu.dot_dimension_numbers<[1], [0], [0], [1], [0, 0, 1, 1], [], []>} : vector<8x8xbf16>, vector<8x8xbf16>, vector<8x8xf32> -> vector<8x8xf32>
    %37 = tpu.reciprocal %34 : vector<8x1xf32> -> vector<8x1xf32>
    %38 = vector.broadcast %37 : vector<8x1xf32> to vector<8x8xf32>
    %39 = arith.mulf %36, %38 : vector<8x8xf32>
    %c0_30 = arith.constant 0 : index
    %c0_31 = arith.constant 0 : index
    %c0_32 = arith.constant 0 : index
    %40 = vector.load %arg4[%c0_30, %c0_31, %c0_32] : memref<1x8x32xf32, #tpu.memory_space<vmem>>, vector<1x8x8xf32>
    %41 = vector.shape_cast %40 : vector<1x8x8xf32> to vector<8x8xf32>
    %42 = vector.shape_cast %39 : vector<8x8xf32> to vector<1x8x8xf32>
    tpu.vector_store %arg4[%c0_30, %c0_31, %c0_32], %42 {strides = array<i32>} : memref<1x8x32xf32, #tpu.memory_space<vmem>>, vector<1x8x8xf32>,
    %c0_33 = arith.constant 0 : index
    %c1_34 = arith.constant 1 : index
    %c0_35 = arith.constant 0 : index
    %c0_36 = arith.constant 0 : index
    %43 = vector.load %arg2[%c0_33, %c1_34, %c0_35, %c0_36] : memref<3x4x32x8xbf16, #tpu.memory_space<vmem>>, vector<1x1x32x8xbf16>
    %44 = vector.shape_cast %43 : vector<1x1x32x8xbf16> to vector<32x8xbf16>
    %cst_37 = arith.constant dense<0.000000e+00> : vector<8x8xf32>
    %45 = tpu.matmul %2, %44, %cst_37 {dimension_numbers = #tpu.dot_dimension_numbers<[1], [0], [0], [1], [0, 0, 1, 1], [], []>} : vector<8x32xbf16>, vector<32x8xbf16>, vector<8x8xf32> -> vector<8x8xf32>
    %c0_38 = arith.constant 0 : index
    %c1_39 = arith.constant 1 : index
    %c0_40 = arith.constant 0 : index
    %c0_41 = arith.constant 0 : index
    %46 = vector.load %arg3[%c0_38, %c1_39, %c0_40, %c0_41] : memref<3x4x1x8xf32, #tpu.memory_space<vmem>>, vector<1x1x1x8xf32>
    %47 = vector.shape_cast %46 : vector<1x1x1x8xf32> to vector<1x8xf32>
    %48 = vector.broadcast %47 : vector<1x8xf32> to vector<8x8xf32>
    %49 = arith.addf %45, %48 : vector<8x8xf32>
    %50 = arith.truncf %49 : vector<8x8xf32> to vector<8x8xbf16>
    %c1_42 = arith.constant 1 : index
    %c1_43 = arith.constant 1 : index
    %c0_44 = arith.constant 0 : index
    %c0_45 = arith.constant 0 : index
    %51 = vector.load %arg2[%c1_42, %c1_43, %c0_44, %c0_45] : memref<3x4x32x8xbf16, #tpu.memory_space<vmem>>, vector<1x1x32x8xbf16>
    %52 = vector.shape_cast %51 : vector<1x1x32x8xbf16> to vector<32x8xbf16>
    %cst_46 = arith.constant dense<0.000000e+00> : vector<8x8xf32>
    %53 = tpu.matmul %2, %52, %cst_46 {dimension_numbers = #tpu.dot_dimension_numbers<[1], [0], [0], [1], [0, 0, 1, 1], [], []>} : vector<8x32xbf16>, vector<32x8xbf16>, vector<8x8xf32> -> vector<8x8xf32>
    %c1_47 = arith.constant 1 : index
    %c1_48 = arith.constant 1 : index
    %c0_49 = arith.constant 0 : index
    %c0_50 = arith.constant 0 : index
    %54 = vector.load %arg3[%c1_47, %c1_48, %c0_49, %c0_50] : memref<3x4x1x8xf32, #tpu.memory_space<vmem>>, vector<1x1x1x8xf32>
    %55 = vector.shape_cast %54 : vector<1x1x1x8xf32> to vector<1x8xf32>
    %56 = vector.broadcast %55 : vector<1x8xf32> to vector<8x8xf32>
    %57 = arith.addf %53, %56 : vector<8x8xf32>
    %58 = arith.truncf %57 : vector<8x8xf32> to vector<8x8xbf16>
    %c2_51 = arith.constant 2 : index
    %c1_52 = arith.constant 1 : index
    %c0_53 = arith.constant 0 : index
    %c0_54 = arith.constant 0 : index
    %59 = vector.load %arg2[%c2_51, %c1_52, %c0_53, %c0_54] : memref<3x4x32x8xbf16, #tpu.memory_space<vmem>>, vector<1x1x32x8xbf16>
    %60 = vector.shape_cast %59 : vector<1x1x32x8xbf16> to vector<32x8xbf16>
    %cst_55 = arith.constant dense<0.000000e+00> : vector<8x8xf32>
    %61 = tpu.matmul %2, %60, %cst_55 {dimension_numbers = #tpu.dot_dimension_numbers<[1], [0], [0], [1], [0, 0, 1, 1], [], []>} : vector<8x32xbf16>, vector<32x8xbf16>, vector<8x8xf32> -> vector<8x8xf32>
    %c2_56 = arith.constant 2 : index
    %c1_57 = arith.constant 1 : index
    %c0_58 = arith.constant 0 : index
    %c0_59 = arith.constant 0 : index
    %62 = vector.load %arg3[%c2_56, %c1_57, %c0_58, %c0_59] : memref<3x4x1x8xf32, #tpu.memory_space<vmem>>, vector<1x1x1x8xf32>
    %63 = vector.shape_cast %62 : vector<1x1x1x8xf32> to vector<1x8xf32>
    %64 = vector.broadcast %63 : vector<1x8xf32> to vector<8x8xf32>
    %65 = arith.addf %61, %64 : vector<8x8xf32>
    %66 = arith.truncf %65 : vector<8x8xf32> to vector<8x8xbf16>
    %cst_60 = arith.constant dense<0.000000e+00> : vector<8x8xf32>
    %67 = tpu.matmul %50, %58, %cst_60 {dimension_numbers = #tpu.dot_dimension_numbers<[1], [1], [0], [0], [0, 0, 1, 0], [], []>} : vector<8x8xbf16>, vector<8x8xbf16>, vector<8x8xf32> -> vector<8x8xf32>
    %cst_61 = arith.constant dense<0xFF800000> : vector<8xf32>
    %68 = vector.multi_reduction <maximumf>, %67, %cst_61 [1] : vector<8x8xf32> to vector<8xf32>
    %69 = vector.shape_cast %68 : vector<8xf32> to vector<8x1xf32>
    %70 = vector.broadcast %69 : vector<8x1xf32> to vector<8x8xf32>
    %71 = arith.subf %67, %70 : vector<8x8xf32>
    %72 = math.exp %71 : vector<8x8xf32>
    %cst_62 = arith.constant dense<0.000000e+00> : vector<8xf32>
    %73 = vector.multi_reduction <add>, %72, %cst_62 [1] : vector<8x8xf32> to vector<8xf32>
    %74 = vector.shape_cast %73 : vector<8xf32> to vector<8x1xf32>
    %75 = arith.truncf %72 : vector<8x8xf32> to vector<8x8xbf16>
    %cst_63 = arith.constant dense<0.000000e+00> : vector<8x8xf32>
    %76 = tpu.matmul %75, %66, %cst_63 {dimension_numbers = #tpu.dot_dimension_numbers<[1], [0], [0], [1], [0, 0, 1, 1], [], []>} : vector<8x8xbf16>, vector<8x8xbf16>, vector<8x8xf32> -> vector<8x8xf32>
    %77 = tpu.reciprocal %74 : vector<8x1xf32> -> vector<8x1xf32>
    %78 = vector.broadcast %77 : vector<8x1xf32> to vector<8x8xf32>
    %79 = arith.mulf %76, %78 : vector<8x8xf32>
    %c0_64 = arith.constant 0 : index
    %c0_65 = arith.constant 0 : index
    %c8 = arith.constant 8 : index
    %80 = vector.load %arg4[%c0_64, %c0_65, %c8] : memref<1x8x32xf32, #tpu.memory_space<vmem>>, vector<1x8x8xf32>
    %81 = vector.shape_cast %80 : vector<1x8x8xf32> to vector<8x8xf32>
    %82 = vector.shape_cast %79 : vector<8x8xf32> to vector<1x8x8xf32>
    tpu.vector_store %arg4[%c0_64, %c0_65, %c8], %82 {strides = array<i32>} : memref<1x8x32xf32, #tpu.memory_space<vmem>>, vector<1x8x8xf32>,
    %c0_66 = arith.constant 0 : index
    %c2_67 = arith.constant 2 : index
    %c0_68 = arith.constant 0 : index
    %c0_69 = arith.constant 0 : index
    %83 = vector.load %arg2[%c0_66, %c2_67, %c0_68, %c0_69] : memref<3x4x32x8xbf16, #tpu.memory_space<vmem>>, vector<1x1x32x8xbf16>
    %84 = vector.shape_cast %83 : vector<1x1x32x8xbf16> to vector<32x8xbf16>
    %cst_70 = arith.constant dense<0.000000e+00> : vector<8x8xf32>
    %85 = tpu.matmul %2, %84, %cst_70 {dimension_numbers = #tpu.dot_dimension_numbers<[1], [0], [0], [1], [0, 0, 1, 1], [], []>} : vector<8x32xbf16>, vector<32x8xbf16>, vector<8x8xf32> -> vector<8x8xf32>
    %c0_71 = arith.constant 0 : index
    %c2_72 = arith.constant 2 : index
    %c0_73 = arith.constant 0 : index
    %c0_74 = arith.constant 0 : index
    %86 = vector.load %arg3[%c0_71, %c2_72, %c0_73, %c0_74] : memref<3x4x1x8xf32, #tpu.memory_space<vmem>>, vector<1x1x1x8xf32>
    %87 = vector.shape_cast %86 : vector<1x1x1x8xf32> to vector<1x8xf32>
    %88 = vector.broadcast %87 : vector<1x8xf32> to vector<8x8xf32>
    %89 = arith.addf %85, %88 : vector<8x8xf32>
    %90 = arith.truncf %89 : vector<8x8xf32> to vector<8x8xbf16>
    %c1_75 = arith.constant 1 : index
    %c2_76 = arith.constant 2 : index
    %c0_77 = arith.constant 0 : index
    %c0_78 = arith.constant 0 : index
    %91 = vector.load %arg2[%c1_75, %c2_76, %c0_77, %c0_78] : memref<3x4x32x8xbf16, #tpu.memory_space<vmem>>, vector<1x1x32x8xbf16>
    %92 = vector.shape_cast %91 : vector<1x1x32x8xbf16> to vector<32x8xbf16>
    %cst_79 = arith.constant dense<0.000000e+00> : vector<8x8xf32>
    %93 = tpu.matmul %2, %92, %cst_79 {dimension_numbers = #tpu.dot_dimension_numbers<[1], [0], [0], [1], [0, 0, 1, 1], [], []>} : vector<8x32xbf16>, vector<32x8xbf16>, vector<8x8xf32> -> vector<8x8xf32>
    %c1_80 = arith.constant 1 : index
    %c2_81 = arith.constant 2 : index
    %c0_82 = arith.constant 0 : index
    %c0_83 = arith.constant 0 : index
    %94 = vector.load %arg3[%c1_80, %c2_81, %c0_82, %c0_83] : memref<3x4x1x8xf32, #tpu.memory_space<vmem>>, vector<1x1x1x8xf32>
    %95 = vector.shape_cast %94 : vector<1x1x1x8xf32> to vector<1x8xf32>
    %96 = vector.broadcast %95 : vector<1x8xf32> to vector<8x8xf32>
    %97 = arith.addf %93, %96 : vector<8x8xf32>
    %98 = arith.truncf %97 : vector<8x8xf32> to vector<8x8xbf16>
    %c2_84 = arith.constant 2 : index
    %c2_85 = arith.constant 2 : index
    %c0_86 = arith.constant 0 : index
    %c0_87 = arith.constant 0 : index
    %99 = vector.load %arg2[%c2_84, %c2_85, %c0_86, %c0_87] : memref<3x4x32x8xbf16, #tpu.memory_space<vmem>>, vector<1x1x32x8xbf16>
    %100 = vector.shape_cast %99 : vector<1x1x32x8xbf16> to vector<32x8xbf16>
    %cst_88 = arith.constant dense<0.000000e+00> : vector<8x8xf32>
    %101 = tpu.matmul %2, %100, %cst_88 {dimension_numbers = #tpu.dot_dimension_numbers<[1], [0], [0], [1], [0, 0, 1, 1], [], []>} : vector<8x32xbf16>, vector<32x8xbf16>, vector<8x8xf32> -> vector<8x8xf32>
    %c2_89 = arith.constant 2 : index
    %c2_90 = arith.constant 2 : index
    %c0_91 = arith.constant 0 : index
    %c0_92 = arith.constant 0 : index
    %102 = vector.load %arg3[%c2_89, %c2_90, %c0_91, %c0_92] : memref<3x4x1x8xf32, #tpu.memory_space<vmem>>, vector<1x1x1x8xf32>
    %103 = vector.shape_cast %102 : vector<1x1x1x8xf32> to vector<1x8xf32>
    %104 = vector.broadcast %103 : vector<1x8xf32> to vector<8x8xf32>
    %105 = arith.addf %101, %104 : vector<8x8xf32>
    %106 = arith.truncf %105 : vector<8x8xf32> to vector<8x8xbf16>
    %cst_93 = arith.constant dense<0.000000e+00> : vector<8x8xf32>
    %107 = tpu.matmul %90, %98, %cst_93 {dimension_numbers = #tpu.dot_dimension_numbers<[1], [1], [0], [0], [0, 0, 1, 0], [], []>} : vector<8x8xbf16>, vector<8x8xbf16>, vector<8x8xf32> -> vector<8x8xf32>
    %cst_94 = arith.constant dense<0xFF800000> : vector<8xf32>
    %108 = vector.multi_reduction <maximumf>, %107, %cst_94 [1] : vector<8x8xf32> to vector<8xf32>
    %109 = vector.shape_cast %108 : vector<8xf32> to vector<8x1xf32>
    %110 = vector.broadcast %109 : vector<8x1xf32> to vector<8x8xf32>
    %111 = arith.subf %107, %110 : vector<8x8xf32>
    %112 = math.exp %111 : vector<8x8xf32>
    %cst_95 = arith.constant dense<0.000000e+00> : vector<8xf32>
    %113 = vector.multi_reduction <add>, %112, %cst_95 [1] : vector<8x8xf32> to vector<8xf32>
    %114 = vector.shape_cast %113 : vector<8xf32> to vector<8x1xf32>
    %115 = arith.truncf %112 : vector<8x8xf32> to vector<8x8xbf16>
    %cst_96 = arith.constant dense<0.000000e+00> : vector<8x8xf32>
    %116 = tpu.matmul %115, %106, %cst_96 {dimension_numbers = #tpu.dot_dimension_numbers<[1], [0], [0], [1], [0, 0, 1, 1], [], []>} : vector<8x8xbf16>, vector<8x8xbf16>, vector<8x8xf32> -> vector<8x8xf32>
    %117 = tpu.reciprocal %114 : vector<8x1xf32> -> vector<8x1xf32>
    %118 = vector.broadcast %117 : vector<8x1xf32> to vector<8x8xf32>
    %119 = arith.mulf %116, %118 : vector<8x8xf32>
    %c0_97 = arith.constant 0 : index
    %c0_98 = arith.constant 0 : index
    %c16 = arith.constant 16 : index
    %120 = vector.load %arg4[%c0_97, %c0_98, %c16] : memref<1x8x32xf32, #tpu.memory_space<vmem>>, vector<1x8x8xf32>
    %121 = vector.shape_cast %120 : vector<1x8x8xf32> to vector<8x8xf32>
    %122 = vector.shape_cast %119 : vector<8x8xf32> to vector<1x8x8xf32>
    tpu.vector_store %arg4[%c0_97, %c0_98, %c16], %122 {strides = array<i32>} : memref<1x8x32xf32, #tpu.memory_space<vmem>>, vector<1x8x8xf32>,
    %c0_99 = arith.constant 0 : index
    %c3 = arith.constant 3 : index
    %c0_100 = arith.constant 0 : index
    %c0_101 = arith.constant 0 : index
    %123 = vector.load %arg2[%c0_99, %c3, %c0_100, %c0_101] : memref<3x4x32x8xbf16, #tpu.memory_space<vmem>>, vector<1x1x32x8xbf16>
    %124 = vector.shape_cast %123 : vector<1x1x32x8xbf16> to vector<32x8xbf16>
    %cst_102 = arith.constant dense<0.000000e+00> : vector<8x8xf32>
    %125 = tpu.matmul %2, %124, %cst_102 {dimension_numbers = #tpu.dot_dimension_numbers<[1], [0], [0], [1], [0, 0, 1, 1], [], []>} : vector<8x32xbf16>, vector<32x8xbf16>, vector<8x8xf32> -> vector<8x8xf32>
    %c0_103 = arith.constant 0 : index
    %c3_104 = arith.constant 3 : index
    %c0_105 = arith.constant 0 : index
    %c0_106 = arith.constant 0 : index
    %126 = vector.load %arg3[%c0_103, %c3_104, %c0_105, %c0_106] : memref<3x4x1x8xf32, #tpu.memory_space<vmem>>, vector<1x1x1x8xf32>
    %127 = vector.shape_cast %126 : vector<1x1x1x8xf32> to vector<1x8xf32>
    %128 = vector.broadcast %127 : vector<1x8xf32> to vector<8x8xf32>
    %129 = arith.addf %125, %128 : vector<8x8xf32>
    %130 = arith.truncf %129 : vector<8x8xf32> to vector<8x8xbf16>
    %c1_107 = arith.constant 1 : index
    %c3_108 = arith.constant 3 : index
    %c0_109 = arith.constant 0 : index
    %c0_110 = arith.constant 0 : index
    %131 = vector.load %arg2[%c1_107, %c3_108, %c0_109, %c0_110] : memref<3x4x32x8xbf16, #tpu.memory_space<vmem>>, vector<1x1x32x8xbf16>
    %132 = vector.shape_cast %131 : vector<1x1x32x8xbf16> to vector<32x8xbf16>
    %cst_111 = arith.constant dense<0.000000e+00> : vector<8x8xf32>
    %133 = tpu.matmul %2, %132, %cst_111 {dimension_numbers = #tpu.dot_dimension_numbers<[1], [0], [0], [1], [0, 0, 1, 1], [], []>} : vector<8x32xbf16>, vector<32x8xbf16>, vector<8x8xf32> -> vector<8x8xf32>
    %c1_112 = arith.constant 1 : index
    %c3_113 = arith.constant 3 : index
    %c0_114 = arith.constant 0 : index
    %c0_115 = arith.constant 0 : index
    %134 = vector.load %arg3[%c1_112, %c3_113, %c0_114, %c0_115] : memref<3x4x1x8xf32, #tpu.memory_space<vmem>>, vector<1x1x1x8xf32>
    %135 = vector.shape_cast %134 : vector<1x1x1x8xf32> to vector<1x8xf32>
    %136 = vector.broadcast %135 : vector<1x8xf32> to vector<8x8xf32>
    %137 = arith.addf %133, %136 : vector<8x8xf32>
    %138 = arith.truncf %137 : vector<8x8xf32> to vector<8x8xbf16>
    %c2_116 = arith.constant 2 : index
    %c3_117 = arith.constant 3 : index
    %c0_118 = arith.constant 0 : index
    %c0_119 = arith.constant 0 : index
    %139 = vector.load %arg2[%c2_116, %c3_117, %c0_118, %c0_119] : memref<3x4x32x8xbf16, #tpu.memory_space<vmem>>, vector<1x1x32x8xbf16>
    %140 = vector.shape_cast %139 : vector<1x1x32x8xbf16> to vector<32x8xbf16>
    %cst_120 = arith.constant dense<0.000000e+00> : vector<8x8xf32>
    %141 = tpu.matmul %2, %140, %cst_120 {dimension_numbers = #tpu.dot_dimension_numbers<[1], [0], [0], [1], [0, 0, 1, 1], [], []>} : vector<8x32xbf16>, vector<32x8xbf16>, vector<8x8xf32> -> vector<8x8xf32>
    %c2_121 = arith.constant 2 : index
    %c3_122 = arith.constant 3 : index
    %c0_123 = arith.constant 0 : index
    %c0_124 = arith.constant 0 : index
    %142 = vector.load %arg3[%c2_121, %c3_122, %c0_123, %c0_124] : memref<3x4x1x8xf32, #tpu.memory_space<vmem>>, vector<1x1x1x8xf32>
    %143 = vector.shape_cast %142 : vector<1x1x1x8xf32> to vector<1x8xf32>
    %144 = vector.broadcast %143 : vector<1x8xf32> to vector<8x8xf32>
    %145 = arith.addf %141, %144 : vector<8x8xf32>
    %146 = arith.truncf %145 : vector<8x8xf32> to vector<8x8xbf16>
    %cst_125 = arith.constant dense<0.000000e+00> : vector<8x8xf32>
    %147 = tpu.matmul %130, %138, %cst_125 {dimension_numbers = #tpu.dot_dimension_numbers<[1], [1], [0], [0], [0, 0, 1, 0], [], []>} : vector<8x8xbf16>, vector<8x8xbf16>, vector<8x8xf32> -> vector<8x8xf32>
    %cst_126 = arith.constant dense<0xFF800000> : vector<8xf32>
    %148 = vector.multi_reduction <maximumf>, %147, %cst_126 [1] : vector<8x8xf32> to vector<8xf32>
    %149 = vector.shape_cast %148 : vector<8xf32> to vector<8x1xf32>
    %150 = vector.broadcast %149 : vector<8x1xf32> to vector<8x8xf32>
    %151 = arith.subf %147, %150 : vector<8x8xf32>
    %152 = math.exp %151 : vector<8x8xf32>
    %cst_127 = arith.constant dense<0.000000e+00> : vector<8xf32>
    %153 = vector.multi_reduction <add>, %152, %cst_127 [1] : vector<8x8xf32> to vector<8xf32>
    %154 = vector.shape_cast %153 : vector<8xf32> to vector<8x1xf32>
    %155 = arith.truncf %152 : vector<8x8xf32> to vector<8x8xbf16>
    %cst_128 = arith.constant dense<0.000000e+00> : vector<8x8xf32>
    %156 = tpu.matmul %155, %146, %cst_128 {dimension_numbers = #tpu.dot_dimension_numbers<[1], [0], [0], [1], [0, 0, 1, 1], [], []>} : vector<8x8xbf16>, vector<8x8xbf16>, vector<8x8xf32> -> vector<8x8xf32>
    %157 = tpu.reciprocal %154 : vector<8x1xf32> -> vector<8x1xf32>
    %158 = vector.broadcast %157 : vector<8x1xf32> to vector<8x8xf32>
    %159 = arith.mulf %156, %158 : vector<8x8xf32>
    %c0_129 = arith.constant 0 : index
    %c0_130 = arith.constant 0 : index
    %c24 = arith.constant 24 : index
    %160 = vector.load %arg4[%c0_129, %c0_130, %c24] : memref<1x8x32xf32, #tpu.memory_space<vmem>>, vector<1x8x8xf32>
    %161 = vector.shape_cast %160 : vector<1x8x8xf32> to vector<8x8xf32>
    %162 = vector.shape_cast %159 : vector<8x8xf32> to vector<1x8x8xf32>
    tpu.vector_store %arg4[%c0_129, %c0_130, %c24], %162 {strides = array<i32>} : memref<1x8x32xf32, #tpu.memory_space<vmem>>, vector<1x8x8xf32>,
    return
  }
  func.func @transform_0(%arg0: i32) -> (i32, i32, i32) {
    %c0_i32 = arith.constant 0 : i32
    %c0_i32_0 = arith.constant 0 : i32
    %c0_i32_1 = arith.constant 0 : i32
    return %arg0, %c0_i32, %c0_i32_0 : i32, i32, i32
  }
  func.func @transform_1(%arg0: i32) -> (i32, i32, i32, i32) {
    %c0_i32 = arith.constant 0 : i32
    %c0_i32_0 = arith.constant 0 : i32
    %c0_i32_1 = arith.constant 0 : i32
    %c0_i32_2 = arith.constant 0 : i32
    %c0_i32_3 = arith.constant 0 : i32
    return %c0_i32, %c0_i32_0, %c0_i32_1, %c0_i32_2 : i32, i32, i32, i32
  }
  func.func @transform_2(%arg0: i32) -> (i32, i32, i32, i32) {
    %c0_i32 = arith.constant 0 : i32
    %c0_i32_0 = arith.constant 0 : i32
    %c0_i32_1 = arith.constant 0 : i32
    %c0_i32_2 = arith.constant 0 : i32
    %c0_i32_3 = arith.constant 0 : i32
    return %c0_i32, %c0_i32_0, %c0_i32_1, %c0_i32_2 : i32, i32, i32, i32
  }
  func.func @transform_3(%arg0: i32) -> (i32, i32, i32) {
    %c0_i32 = arith.constant 0 : i32
    %c0_i32_0 = arith.constant 0 : i32
    %c0_i32_1 = arith.constant 0 : i32
    return %arg0, %c0_i32, %c0_i32_0 : i32, i32, i32
  }
}

</mosaic_0001>

<llo_original>
// kernel: tpu_custom_call.1
$region0: #{tpu_custom_call.1}
  #allocation0 [shape = 'u32[]', space=smem, size = 0x4, offset = 0x4, fixed_abs, tag = 'smem constant byte address 0x4 - core index']
  #allocation1 [shape = 'u32[144,128]{1,0:T(1,128)}', space=vmem, size = 0x12000, scoped, tag = 'internal scratch']
  %s0 = inlined_call_operand.hbm [shape: f32[2,8,32], index: 0, kind: input, shape index: {}]
  %s1 = inlined_call_operand.hbm [shape: bf16[3,4,32,8], index: 1, kind: input, shape index: {}]
  %s2 = inlined_call_operand.hbm [shape: f32[3,4,1,8], index: 2, kind: input, shape index: {}]
  %s3 = inlined_call_operand.hbm [shape: f32[2,8,32], index: 3, kind: output, shape index: {}]
  %s4 = sld [smem:[#allocation0]]
  $region57: #{tpu_custom_call.1} parent=0
    _
  %s6 = ssub.s32 1, %s4
  %s7 = scalar_select 0, %s6, %s4
  $region1: #{tpu_custom_call.1} parent=0
    #allocation2 [shape = 'u8[8192]{0}', space=vmem, size = 0x2000, scoped, tag = 'input window, operand 0']
    #allocation3 [shape = 's32[2]{0}', space=sflag, size = 0x8, scoped, tag = 'scoped memory for tpu_custom_call.1']
    #allocation4 [shape = 's32[2]{0}', space=sflag, size = 0x8, scoped, tag = 'scoped memory for tpu_custom_call.1']
    #allocation5 [shape = 'u8[98304]{0}', space=vmem, size = 0x18000, scoped, tag = 'input window, operand 1, single buffered']
    #allocation6 [shape = 's32[1]{0}', space=sflag, size = 0x4, scoped, tag = 'scoped memory for tpu_custom_call.1']
    #allocation7 [shape = 'u8[6144]{0}', space=vmem, size = 0x1800, scoped, tag = 'input window, operand 2, single buffered']
    #allocation8 [shape = 'u8[8192]{0}', space=vmem, size = 0x2000, scoped, tag = 'output window, operand 0']
    %8 = vsyncpa [#allocation3], 0
    %s9 = scalar_lea.sflag [#allocation3], 1
    %10 = vsyncpa %s9, 0
    %11 = vsyncpa [#allocation6], 0
    %12 = vsyncpa [#allocation4], 0
    %s13 = scalar_lea.sflag [#allocation4], 1
    %14 = vsyncpa %s13, 0
    loop: start=0, step=1, limit=4
    $region2: #{tpu_custom_call.1} parent=1 // loop_pre_header
      _
    $region3: #{tpu_custom_call.1} parent=1 // loop_header
      %s16 = sphi 0, %s20
      %p17 = scmp.ge.s32.totalorder %s16, 4
      %s26 = sphi 0, %s28
      %s29 = sphi 0, %s26
      %s30 = sphi 0, %s29
      %s46 = sphi 0, %s30
      %s50 = sphi 0, %s50
      %s52 = sphi 0, %s50
      %s53 = sphi 0, %s52
      %s67 = sphi 0, %s53
      %s71 = sphi 0, %s71
      %s73 = sphi 0, %s71
      %s74 = sphi 0, %s73
      %s88 = sphi 0, %s74
      %s94 = sphi 0, %s96
      %s97 = sphi 0, %s94
      %s98 = sphi 0, %s97
      %s114 = sphi 0, %s98
    $region4: #{tpu_custom_call.1} parent=1 // loop_header_branch
      %19 = sbr.rel (%p17) target = $region8
    $region5: #{tpu_custom_call.1} parent=1 // loop_body
      %s21 = ssub.s32 %s16, 1
      %s22 = ssub.s32 %s16, 2
      %s23 = sadd.s32 %s16, 1
      %s24 = ssub.s32 %s16, %s23
      %p25 = scmp.eq.s32.totalorder %s24, 0
      %s27 = sadd.s32 %s26, 1
      %s28 = scalar_select %p25, %s26, %s27
      %p31 = pneg %p25
      %p32 = scmp.eq.s32.totalorder %s16, 1
      %p33 = por %p31, %p32
      %p34 = scmp.ne.s32.totalorder %s26, %s29
      %p35 = scmp.eq.s32.totalorder %s16, 0
      %p36 = por %p34, %p35
      %p37 = scmp.ne.s32.totalorder %s26, %s29
      %p38 = scmp.eq.s32.totalorder %s21, 1
      %p39 = por %p37, %p38
      %p40 = scmp.ne.s32.totalorder %s29, %s30
      %p41 = scmp.eq.s32.totalorder %s21, 0
      %p42 = por %p40, %p41
      %p43 = scmp.ne.s32.totalorder %s29, %s30
      %p44 = scmp.eq.s32.totalorder %s22, 1
      %p45 = por %p43, %p44
      %p47 = scmp.ne.s32.totalorder %s30, %s46
      %p48 = scmp.eq.s32.totalorder %s22, 0
      %p49 = por %p47, %p48
      %s51 = sadd.s32 %s50, 1
      %p54 = scmp.eq.s32.totalorder %s16, 1
      %p55 = scmp.ne.s32.totalorder %s50, %s52
      %p56 = scmp.eq.s32.totalorder %s16, 0
      %p57 = por %p55, %p56
      %p58 = scmp.ne.s32.totalorder %s50, %s52
      %p59 = scmp.eq.s32.totalorder %s21, 1
      %p60 = por %p58, %p59
      %p61 = scmp.ne.s32.totalorder %s52, %s53
      %p62 = scmp.eq.s32.totalorder %s21, 0
      %p63 = por %p61, %p62
      %p64 = scmp.ne.s32.totalorder %s52, %s53
      %p65 = scmp.eq.s32.totalorder %s22, 1
      %p66 = por %p64, %p65
      %p68 = scmp.ne.s32.totalorder %s53, %s67
      %p69 = scmp.eq.s32.totalorder %s22, 0
      %p70 = por %p68, %p69
      %s72 = sadd.s32 %s71, 1
      %p75 = scmp.eq.s32.totalorder %s16, 1
      %p76 = scmp.ne.s32.totalorder %s71, %s73
      %p77 = scmp.eq.s32.totalorder %s16, 0
      %p78 = por %p76, %p77
      %p79 = scmp.ne.s32.totalorder %s71, %s73
      %p80 = scmp.eq.s32.totalorder %s21, 1
      %p81 = por %p79, %p80
      %p82 = scmp.ne.s32.totalorder %s73, %s74
      %p83 = scmp.eq.s32.totalorder %s21, 0
      %p84 = por %p82, %p83
      %p85 = scmp.ne.s32.totalorder %s73, %s74
      %p86 = scmp.eq.s32.totalorder %s22, 1
      %p87 = por %p85, %p86
      %p89 = scmp.ne.s32.totalorder %s74, %s88
      %p90 = scmp.eq.s32.totalorder %s22, 0
      %p91 = por %p89, %p90
      %s92 = ssub.s32 %s16, %s23
      %p93 = scmp.eq.s32.totalorder %s92, 0
      %s95 = sadd.s32 %s94, 1
      %s96 = scalar_select %p93, %s94, %s95
      %p99 = pneg %p93
      %p100 = scmp.eq.s32.totalorder %s16, 1
      %p101 = por %p99, %p100
      %p102 = scmp.ne.s32.totalorder %s94, %s97
      %p103 = scmp.eq.s32.totalorder %s16, 0
      %p104 = por %p102, %p103
      %p105 = scmp.ne.s32.totalorder %s94, %s97
      %p106 = scmp.eq.s32.totalorder %s21, 1
      %p107 = por %p105, %p106
      %p108 = scmp.ne.s32.totalorder %s97, %s98
      %p109 = scmp.eq.s32.totalorder %s21, 0
      %p110 = por %p108, %p109
      %p111 = scmp.ne.s32.totalorder %s97, %s98
      %p112 = scmp.eq.s32.totalorder %s22, 1
      %p113 = por %p111, %p112
      %p115 = scmp.ne.s32.totalorder %s98, %s114
      %p116 = scmp.eq.s32.totalorder %s22, 0
      %p117 = por %p115, %p116
      %p118 = scmp.le.s32.totalorder 1, %s16
      %p119 = scmp.lt.s32.totalorder %s16, 3
      %p120 = pnand %p118, %p119
      %p121 = pneg %p120
      // Predicated region
      $region9: #{tpu_custom_call.1} parent=5 // pred_check
        _
      $region10: #{tpu_custom_call.1} parent=5 // pred_check_branch
        %123 = sbr.rel (%p120) target = $region12
      $region11: #{tpu_custom_call.1} parent=5 // pred_region
        %s124 = ssub.s32 %s16, 1
        // Predicated region
        $region13: #{tpu_custom_call.1} parent=11 // pred_check
          %p125 = pneg %p63
        $region14: #{tpu_custom_call.1} parent=11 // pred_check_branch
          %127 = sbr.rel (%p125) target = $region16
        $region15: #{tpu_custom_call.1} parent=11 // pred_region
          %s129 = ssub.s32 3072, 3072
          %130 = vsyncadd [#allocation6], %s129
          %s131 = sshll.u32 [#allocation5], 4
          %s132 = int_to_ptr.vmem [resolvable:$true] %s131
          %137 = dma.hbm_to_vmem [thread:$0]  %s1, 3072, %s132, [#allocation6], 64, 64, 4
        $region16: #{tpu_custom_call.1} parent=11 // pred_fallthru
          _
        // Predicated region
        $region17: #{tpu_custom_call.1} parent=11 // pred_check
          %p138 = pneg %p84
        $region18: #{tpu_custom_call.1} parent=11 // pred_check_branch
          %140 = sbr.rel (%p138) target = $region20
        $region19: #{tpu_custom_call.1} parent=11 // pred_region
          %s142 = ssub.s32 192, 192
          %143 = vsyncadd [#allocation6], %s142
          %s144 = sshll.u32 [#allocation7], 4
          %s145 = int_to_ptr.vmem [resolvable:$true] %s144
          %150 = dma.hbm_to_vmem [thread:$0]  %s2, 192, %s145, [#allocation6], 16, 16, 1
        $region20: #{tpu_custom_call.1} parent=11 // pred_fallthru
          _
      $region12: #{tpu_custom_call.1} parent=5 // pred_fallthru
        _
      %p151 = scmp.lt.s32.totalorder %s16, 2
      // Predicated region
      $region21: #{tpu_custom_call.1} parent=5 // pred_check
        %p152 = pneg %p151
      $region22: #{tpu_custom_call.1} parent=5 // pred_check_branch
        %154 = sbr.rel (%p152) target = $region24
      $region23: #{tpu_custom_call.1} parent=5 // pred_region
        // Predicated region
        $region25: #{tpu_custom_call.1} parent=23 // pred_check
          %p155 = pneg %p36
        $region26: #{tpu_custom_call.1} parent=23 // pred_check_branch
          %157 = sbr.rel (%p155) target = $region28
        $region27: #{tpu_custom_call.1} parent=23 // pred_region
          %s158 = sand.u32 %s26, 1
          %s159 = scalar_lea.sflag [#allocation3], %s158
          %s160 = sand.u32 %s26, 1
          %s161 = smul.addr %s160, 8
          %s162 = scalar_lea.vmem [#allocation2], %s161
          %s164 = ssub.s32 128, 128
          %165 = vsyncadd %s159, %s164
          %s166 = smul.addr %s16, 128
          %s167 = scalar_lea.hbm %s0, %s166
          %s169 = sshll.u32 %s162, 4
          %s170 = int_to_ptr.vmem [resolvable:$true] %s169
          %172 = dma.hbm_to_vmem [thread:$0]  %s167, 128, %s170, %s159
        $region28: #{tpu_custom_call.1} parent=23 // pred_fallthru
          _
      $region24: #{tpu_custom_call.1} parent=5 // pred_fallthru
        _
      %p173 = scmp.le.s32.totalorder 1, %s16
      %p174 = scmp.lt.s32.totalorder %s16, 3
      %p175 = pnand %p173, %p174
      %p176 = pneg %p175
      // Predicated region
      $region29: #{tpu_custom_call.1} parent=5 // pred_check
        _
      $region30: #{tpu_custom_call.1} parent=5 // pred_check_branch
        %178 = sbr.rel (%p175) target = $region32
      $region31: #{tpu_custom_call.1} parent=5 // pred_region
        %s179 = ssub.s32 %s16, 1
        %s180 = sand.u32 %s29, 1
        %s181 = scalar_lea.sflag [#allocation3], %s180
        %s182 = sand.u32 %s29, 1
        %s183 = smul.addr %s182, 8
        %s184 = scalar_lea.vmem [#allocation2], %s183
        // Predicated region
        $region33: #{tpu_custom_call.1} parent=31 // pred_check
          %p185 = pneg %p42
        $region34: #{tpu_custom_call.1} parent=31 // pred_check_branch
          %187 = sbr.rel (%p185) target = $region36
        $region35: #{tpu_custom_call.1} parent=31 // pred_region
          %188 = dma.done %s181, 128
        $region36: #{tpu_custom_call.1} parent=31 // pred_fallthru
          _
        // Predicated region
        $region37: #{tpu_custom_call.1} parent=31 // pred_check
          %p189 = pneg %p63
        $region38: #{tpu_custom_call.1} parent=31 // pred_check_branch
          %191 = sbr.rel (%p189) target = $region40
        $region39: #{tpu_custom_call.1} parent=31 // pred_region
          %192 = dma.done [#allocation6], 3072
        $region40: #{tpu_custom_call.1} parent=31 // pred_fallthru
          _
        // Predicated region
        $region41: #{tpu_custom_call.1} parent=31 // pred_check
          %p193 = pneg %p84
        $region42: #{tpu_custom_call.1} parent=31 // pred_check_branch
          %195 = sbr.rel (%p193) target = $region44
        $region43: #{tpu_custom_call.1} parent=31 // pred_region
          %196 = dma.done [#allocation6], 192
        $region44: #{tpu_custom_call.1} parent=31 // pred_fallthru
          _
        %s197 = sand.u32 %s29, 1
        %s198 = scalar_lea.sflag [#allocation3], %s197
        %s199 = sand.u32 %s29, 1
        %s200 = smul.addr %s199, 8
        %s201 = scalar_lea.vmem [#allocation2], %s200
        %p202 = pneg %p42
        %p203 = pneg %p39
        %p204 = pneg %p63
        %p205 = pneg %p60
        %p206 = pneg %p84
        %p207 = pneg %p81
        %p208 = pneg %p110
        %p209 = pneg %p107
        %s210 = sand.u32 %s97, 1
        %s211 = scalar_lea.sflag [#allocation4], %s210
        %s212 = sand.u32 %s97, 1
        %s213 = smul.addr %s212, 8
        %s214 = scalar_lea.vmem [#allocation8], %s213
        %v216 = vld [vmem:[%s184] sm:$0xff]
        %v217 = vpack.c.bf16 %v216, %v216
        %v218 = vld [vmem:[#allocation5] sm:$0xf]
        %v219 = vld [vmem:[#allocation5 + $0x4] sm:$0xf]
        %v220 = vld [vmem:[#allocation5 + $0x8] sm:$0xf]
        %v221 = vld [vmem:[#allocation5 + $0xc] sm:$0xf]
        %v222 = vld [vmem:[#allocation7] sm:$0x1]
        %v224 = vlaneseq
        %v225 = vshrl.u32 %v224, 7
        %v226 = vsub.s32 0, %v225
        %v227 = vrot.slane %v222, %v226
        %v233 = vunpack.c.l.b16 %v218
        %v234 = vunpack.c.l.b16 %v219
        %v235 = vunpack.c.l.b16 %v220
        %v236 = vunpack.c.l.b16 %v221
        %v237 = vpack.c.b16 %v234, %v233
        %v238 = vpack.c.b16 %v236, %v235
        %vm241 = vcmask 261120
        %v243 = vsel %vm241, %v217, 0
        %245 = vmatprep.subr.bf16.mxu0 0
        %246 = vmatpush1.bf16.msra.mxu0 %v237
        %247 = vmatprep.subr.bf16.mxu0 0
        %248 = vmatpush1.bf16.msra.mxu0 %v238
        %249 = vmatprep.subr.bf16.mxu0 0
        %250 = vmatpush1.bf16.msra.mxu0 0
        %251 = vmatprep.subr.bf16.mxu0 0
        %252 = vmatpush1.bf16.msra.mxu0 0
        %253 = vmatprep.subr.bf16.mxu0 0
        %254 = vmatpush1.bf16.msra.mxu0 0
        %255 = vmatprep.subr.bf16.mxu0 0
        %256 = vmatpush1.bf16.msra.mxu0 0
        %257 = vmatprep.subr.bf16.mxu0 0
        %258 = vmatpush1.bf16.msra.mxu0 0
        %259 = vmatprep.subr.bf16.mxu0 0
        %260 = vmatpush1.bf16.msra.mxu0 0
        %261 = vmatprep.subr.bf16.mxu0 0
        %262 = vmatpush1.bf16.msra.mxu0 0
        %263 = vmatprep.subr.bf16.mxu0 0
        %264 = vmatpush1.bf16.msra.mxu0 0
        %265 = vmatprep.subr.bf16.mxu0 0
        %266 = vmatpush1.bf16.msra.mxu0 0
        %267 = vmatprep.subr.bf16.mxu0 0
        %268 = vmatpush1.bf16.msra.mxu0 0
        %269 = vmatprep.subr.bf16.mxu0 0
        %270 = vmatpush1.bf16.msra.mxu0 0
        %271 = vmatprep.subr.bf16.mxu0 0
        %272 = vmatpush1.bf16.msra.mxu0 0
        %273 = vmatprep.subr.bf16.mxu0 0
        %274 = vmatpush1.bf16.msra.mxu0 0
        %275 = vmatprep.subr.bf16.mxu0 0
        %276 = vmatpush1.bf16.msra.mxu0 0
        %277 = vmatprep.mubr.bf16.mxu0 0
        %278 = vmatmul.mubr.bf16.gmra.mrb[0].mxu0 %v243
        %v279 = vpop.f32.mrb[0].mxu0
        %v280 = vadd.f32 %v227, %v279
        %v281 = vpop.f32.mrb[0].mxu0
        %v282 = vpop.f32.mrb[0].mxu0
        %v283 = vpop.f32.mrb[0].mxu0
        %284 = vdwg.mxu0
        %v285 = vpack.c.bf16 %v280, %v280
        %s286 = scalar_lea.vmem [#allocation5], 64
        %v287 = vld [vmem:[%s286] sm:$0xf]
        %v288 = vld [vmem:[%s286 + $0x4] sm:$0xf]
        %v289 = vld [vmem:[%s286 + $0x8] sm:$0xf]
        %v290 = vld [vmem:[%s286 + $0xc] sm:$0xf]
        %s291 = scalar_lea.vmem [#allocation7], 4
        %v292 = vld [vmem:[%s291] sm:$0x1]
        %v294 = vlaneseq
        %v295 = vshrl.u32 %v294, 7
        %v296 = vsub.s32 0, %v295
        %v297 = vrot.slane %v292, %v296
        %v303 = vunpack.c.l.b16 %v287
        %v304 = vunpack.c.l.b16 %v288
        %v305 = vunpack.c.l.b16 %v289
        %v306 = vunpack.c.l.b16 %v290
        %v307 = vpack.c.b16 %v304, %v303
        %v308 = vpack.c.b16 %v306, %v305
        %311 = vmatprep.subr.bf16.mxu0 0
        %312 = vmatpush1.bf16.msra.mxu0 %v307
        %313 = vmatprep.subr.bf16.mxu0 0
        %314 = vmatpush1.bf16.msra.mxu0 %v308
        %315 = vmatprep.subr.bf16.mxu0 0
        %316 = vmatpush1.bf16.msra.mxu0 0
        %317 = vmatprep.subr.bf16.mxu0 0
        %318 = vmatpush1.bf16.msra.mxu0 0
        %319 = vmatprep.subr.bf16.mxu0 0
        %320 = vmatpush1.bf16.msra.mxu0 0
        %321 = vmatprep.subr.bf16.mxu0 0
        %322 = vmatpush1.bf16.msra.mxu0 0
        %323 = vmatprep.subr.bf16.mxu0 0
        %324 = vmatpush1.bf16.msra.mxu0 0
        %325 = vmatprep.subr.bf16.mxu0 0
        %326 = vmatpush1.bf16.msra.mxu0 0
        %327 = vmatprep.subr.bf16.mxu0 0
        %328 = vmatpush1.bf16.msra.mxu0 0
        %329 = vmatprep.subr.bf16.mxu0 0
        %330 = vmatpush1.bf16.msra.mxu0 0
        %331 = vmatprep.subr.bf16.mxu0 0
        %332 = vmatpush1.bf16.msra.mxu0 0
        %333 = vmatprep.subr.bf16.mxu0 0
        %334 = vmatpush1.bf16.msra.mxu0 0
        %335 = vmatprep.subr.bf16.mxu0 0
        %336 = vmatpush1.bf16.msra.mxu0 0
        %337 = vmatprep.subr.bf16.mxu0 0
        %338 = vmatpush1.bf16.msra.mxu0 0
        %339 = vmatprep.subr.bf16.mxu0 0
        %340 = vmatpush1.bf16.msra.mxu0 0
        %341 = vmatprep.subr.bf16.mxu0 0
        %342 = vmatpush1.bf16.msra.mxu0 0
        %343 = vmatprep.mubr.bf16.mxu0 0
        %344 = vmatmul.mubr.bf16.gmra.mrb[0].mxu0 %v243
        %v345 = vpop.f32.mrb[0].mxu0
        %v346 = vadd.f32 %v297, %v345
        %v347 = vpop.f32.mrb[0].mxu0
        %v348 = vpop.f32.mrb[0].mxu0
        %v349 = vpop.f32.mrb[0].mxu0
        %350 = vdwg.mxu0
        %v351 = vpack.c.bf16 %v346, %v346
        %s352 = scalar_lea.vmem [#allocation5], 128
        %v353 = vld [vmem:[%s352] sm:$0xf]
        %v354 = vld [vmem:[%s352 + $0x4] sm:$0xf]
        %v355 = vld [vmem:[%s352 + $0x8] sm:$0xf]
        %v356 = vld [vmem:[%s352 + $0xc] sm:$0xf]
        %s357 = scalar_lea.vmem [#allocation7], 8
        %v358 = vld [vmem:[%s357] sm:$0x1]
        %v360 = vlaneseq
        %v361 = vshrl.u32 %v360, 7
        %v362 = vsub.s32 0, %v361
        %v363 = vrot.slane %v358, %v362
        %v369 = vunpack.c.l.b16 %v353
        %v370 = vunpack.c.l.b16 %v354
        %v371 = vunpack.c.l.b16 %v355
        %v372 = vunpack.c.l.b16 %v356
        %v373 = vpack.c.b16 %v370, %v369
        %v374 = vpack.c.b16 %v372, %v371
        %377 = vmatprep.subr.bf16.mxu0 0
        %378 = vmatpush1.bf16.msra.mxu0 %v373
        %379 = vmatprep.subr.bf16.mxu0 0
        %380 = vmatpush1.bf16.msra.mxu0 %v374
        %381 = vmatprep.subr.bf16.mxu0 0
        %382 = vmatpush1.bf16.msra.mxu0 0
        %383 = vmatprep.subr.bf16.mxu0 0
        %384 = vmatpush1.bf16.msra.mxu0 0
        %385 = vmatprep.subr.bf16.mxu0 0
        %386 = vmatpush1.bf16.msra.mxu0 0
        %387 = vmatprep.subr.bf16.mxu0 0
        %388 = vmatpush1.bf16.msra.mxu0 0
        %389 = vmatprep.subr.bf16.mxu0 0
        %390 = vmatpush1.bf16.msra.mxu0 0
        %391 = vmatprep.subr.bf16.mxu0 0
        %392 = vmatpush1.bf16.msra.mxu0 0
        %393 = vmatprep.subr.bf16.mxu0 0
        %394 = vmatpush1.bf16.msra.mxu0 0
        %395 = vmatprep.subr.bf16.mxu0 0
        %396 = vmatpush1.bf16.msra.mxu0 0
        %397 = vmatprep.subr.bf16.mxu0 0
        %398 = vmatpush1.bf16.msra.mxu0 0
        %399 = vmatprep.subr.bf16.mxu0 0
        %400 = vmatpush1.bf16.msra.mxu0 0
        %401 = vmatprep.subr.bf16.mxu0 0
        %402 = vmatpush1.bf16.msra.mxu0 0
        %403 = vmatprep.subr.bf16.mxu0 0
        %404 = vmatpush1.bf16.msra.mxu0 0
        %405 = vmatprep.subr.bf16.mxu0 0
        %406 = vmatpush1.bf16.msra.mxu0 0
        %407 = vmatprep.subr.bf16.mxu0 0
        %408 = vmatpush1.bf16.msra.mxu0 0
        %409 = vmatprep.mubr.bf16.mxu0 0
        %410 = vmatmul.mubr.bf16.gmra.mrb[0].mxu0 %v243
        %v411 = vpop.f32.mrb[0].mxu0
        %v412 = vadd.f32 %v363, %v411
        %v413 = vpop.f32.mrb[0].mxu0
        %v414 = vpop.f32.mrb[0].mxu0
        %v415 = vpop.f32.mrb[0].mxu0
        %416 = vdwg.mxu0
        %v417 = vpack.c.bf16 %v412, %v412
        %vm418 = vcmask 64512
        %v420 = vsel %vm418, %v285, 0
        %v423 = vsel %vm418, %v351, 0
        %425 = vmatprep.subr.bf16.mxu0 0
        %426 = vmatpush1.bf16.xpose.msra.mxu0 %v423
        %427 = vmatprep.subr.bf16.mxu0 0
        %428 = vmatpush1.bf16.xpose.msra.mxu0 0
        %429 = vmatprep.subr.bf16.mxu0 0
        %430 = vmatpush1.bf16.xpose.msra.mxu0 0
        %431 = vmatprep.subr.bf16.mxu0 0
        %432 = vmatpush1.bf16.xpose.msra.mxu0 0
        %433 = vmatprep.subr.bf16.mxu0 0
        %434 = vmatpush1.bf16.xpose.msra.mxu0 0
        %435 = vmatprep.subr.bf16.mxu0 0
        %436 = vmatpush1.bf16.xpose.msra.mxu0 0
        %437 = vmatprep.subr.bf16.mxu0 0
        %438 = vmatpush1.bf16.xpose.msra.mxu0 0
        %439 = vmatprep.subr.bf16.mxu0 0
        %440 = vmatpush1.bf16.xpose.msra.mxu0 0
        %441 = vmatprep.subr.bf16.mxu0 0
        %442 = vmatpush1.bf16.xpose.msra.mxu0 0
        %443 = vmatprep.subr.bf16.mxu0 0
        %444 = vmatpush1.bf16.xpose.msra.mxu0 0
        %445 = vmatprep.subr.bf16.mxu0 0
        %446 = vmatpush1.bf16.xpose.msra.mxu0 0
        %447 = vmatprep.subr.bf16.mxu0 0
        %448 = vmatpush1.bf16.xpose.msra.mxu0 0
        %449 = vmatprep.subr.bf16.mxu0 0
        %450 = vmatpush1.bf16.xpose.msra.mxu0 0
        %451 = vmatprep.subr.bf16.mxu0 0
        %452 = vmatpush1.bf16.xpose.msra.mxu0 0
        %453 = vmatprep.subr.bf16.mxu0 0
        %454 = vmatpush1.bf16.xpose.msra.mxu0 0
        %455 = vmatprep.subr.bf16.mxu0 0
        %456 = vmatpush1.bf16.xpose.msra.mxu0 0
        %457 = vmatprep.mubr.bf16.mxu0 0
        %458 = vmatmul.mubr.bf16.gmra.mrb[0].mxu0 %v420
        %v459 = vpop.f32.mrb[0].mxu0
        %v460 = vadd.f32 0.0, %v459
        %v461 = vpop.f32.mrb[0].mxu0
        %v462 = vpop.f32.mrb[0].mxu0
        %v463 = vpop.f32.mrb[0].mxu0
        %464 = vdwg.mxu0
        %v465 = vsel %vm418, %v460, -inf
        %466 = vmax.xlane.f32.xlu0 %v465
        %v467 = vpop.xlane.xlu0 %466
        %v468 = vsub.f32 %v460, %v467
        %v469 = vmul.f32 %v468, 1.442695
        %v470 = vpow.pop %v469
        %v471 = vsel %vm418, %v470, 0.0
        %472 = vadd.xlane.f32.xlu0 %v471
        %v473 = vpop.xlane.xlu0 %472
        %v474 = vpack.c.bf16 %v470, %v470
        %v476 = vsel %vm418, %v474, 0
        %vm478 = vcmask 1043456
        %v480 = vsel %vm478, %v417, 0
        %482 = vmatprep.subr.bf16.mxu0 0
        %483 = vmatpush1.bf16.msra.mxu0 %v480
        %484 = vmatprep.subr.bf16.mxu0 0
        %485 = vmatpush1.bf16.msra.mxu0 0
        %486 = vmatprep.subr.bf16.mxu0 0
        %487 = vmatpush1.bf16.msra.mxu0 0
        %488 = vmatprep.subr.bf16.mxu0 0
        %489 = vmatpush1.bf16.msra.mxu0 0
        %490 = vmatprep.subr.bf16.mxu0 0
        %491 = vmatpush1.bf16.msra.mxu0 0
        %492 = vmatprep.subr.bf16.mxu0 0
        %493 = vmatpush1.bf16.msra.mxu0 0
        %494 = vmatprep.subr.bf16.mxu0 0
        %495 = vmatpush1.bf16.msra.mxu0 0
        %496 = vmatprep.subr.bf16.mxu0 0
        %497 = vmatpush1.bf16.msra.mxu0 0
        %498 = vmatprep.subr.bf16.mxu0 0
        %499 = vmatpush1.bf16.msra.mxu0 0
        %500 = vmatprep.subr.bf16.mxu0 0
        %501 = vmatpush1.bf16.msra.mxu0 0
        %502 = vmatprep.subr.bf16.mxu0 0
        %503 = vmatpush1.bf16.msra.mxu0 0
        %504 = vmatprep.subr.bf16.mxu0 0
        %505 = vmatpush1.bf16.msra.mxu0 0
        %506 = vmatprep.subr.bf16.mxu0 0
        %507 = vmatpush1.bf16.msra.mxu0 0
        %508 = vmatprep.subr.bf16.mxu0 0
        %509 = vmatpush1.bf16.msra.mxu0 0
        %510 = vmatprep.subr.bf16.mxu0 0
        %511 = vmatpush1.bf16.msra.mxu0 0
        %512 = vmatprep.subr.bf16.mxu0 0
        %513 = vmatpush1.bf16.msra.mxu0 0
        %514 = vmatprep.mubr.bf16.mxu0 0
        %515 = vmatmul.mubr.bf16.gmra.mrb[0].mxu0 %v476
        %v516 = vpop.f32.mrb[0].mxu0
        %v517 = vadd.f32 0.0, %v516
        %v518 = vpop.f32.mrb[0].mxu0
        %v519 = vpop.f32.mrb[0].mxu0
        %v520 = vpop.f32.mrb[0].mxu0
        %521 = vdwg.mxu0
        %v522 = vrcp.pop %v473
        %v523 = vmul.f32 %v517, %v522
        %524 = vst.msk [vmem:[%s214] sm:$0xff] %vm418, %v523
        %s525 = scalar_lea.vmem [#allocation5], 16
        %v526 = vld [vmem:[%s525] sm:$0xf]
        %v527 = vld [vmem:[%s525 + $0x4] sm:$0xf]
        %v528 = vld [vmem:[%s525 + $0x8] sm:$0xf]
        %v529 = vld [vmem:[%s525 + $0xc] sm:$0xf]
        %s530 = scalar_lea.vmem [#allocation7], 1
        %v531 = vld [vmem:[%s530] sm:$0x1]
        %v533 = vlaneseq
        %v534 = vshrl.u32 %v533, 7
        %v535 = vsub.s32 0, %v534
        %v536 = vrot.slane %v531, %v535
        %v542 = vunpack.c.l.b16 %v526
        %v543 = vunpack.c.l.b16 %v527
        %v544 = vunpack.c.l.b16 %v528
        %v545 = vunpack.c.l.b16 %v529
        %v546 = vpack.c.b16 %v543, %v542
        %v547 = vpack.c.b16 %v545, %v544
        %550 = vmatprep.subr.bf16.mxu0 0
        %551 = vmatpush1.bf16.msra.mxu0 %v546
        %552 = vmatprep.subr.bf16.mxu0 0
        %553 = vmatpush1.bf16.msra.mxu0 %v547
        %554 = vmatprep.subr.bf16.mxu0 0
        %555 = vmatpush1.bf16.msra.mxu0 0
        %556 = vmatprep.subr.bf16.mxu0 0
        %557 = vmatpush1.bf16.msra.mxu0 0
        %558 = vmatprep.subr.bf16.mxu0 0
        %559 = vmatpush1.bf16.msra.mxu0 0
        %560 = vmatprep.subr.bf16.mxu0 0
        %561 = vmatpush1.bf16.msra.mxu0 0
        %562 = vmatprep.subr.bf16.mxu0 0
        %563 = vmatpush1.bf16.msra.mxu0 0
        %564 = vmatprep.subr.bf16.mxu0 0
        %565 = vmatpush1.bf16.msra.mxu0 0
        %566 = vmatprep.subr.bf16.mxu0 0
        %567 = vmatpush1.bf16.msra.mxu0 0
        %568 = vmatprep.subr.bf16.mxu0 0
        %569 = vmatpush1.bf16.msra.mxu0 0
        %570 = vmatprep.subr.bf16.mxu0 0
        %571 = vmatpush1.bf16.msra.mxu0 0
        %572 = vmatprep.subr.bf16.mxu0 0
        %573 = vmatpush1.bf16.msra.mxu0 0
        %574 = vmatprep.subr.bf16.mxu0 0
        %575 = vmatpush1.bf16.msra.mxu0 0
        %576 = vmatprep.subr.bf16.mxu0 0
        %577 = vmatpush1.bf16.msra.mxu0 0
        %578 = vmatprep.subr.bf16.mxu0 0
        %579 = vmatpush1.bf16.msra.mxu0 0
        %580 = vmatprep.subr.bf16.mxu0 0
        %581 = vmatpush1.bf16.msra.mxu0 0
        %582 = vmatprep.mubr.bf16.mxu0 0
        %583 = vmatmul.mubr.bf16.gmra.mrb[0].mxu0 %v243
        %v584 = vpop.f32.mrb[0].mxu0
        %v585 = vadd.f32 %v536, %v584
        %v586 = vpop.f32.mrb[0].mxu0
        %v587 = vpop.f32.mrb[0].mxu0
        %v588 = vpop.f32.mrb[0].mxu0
        %589 = vdwg.mxu0
        %v590 = vpack.c.bf16 %v585, %v585
        %s591 = scalar_lea.vmem [#allocation5], 80
        %v592 = vld [vmem:[%s591] sm:$0xf]
        %v593 = vld [vmem:[%s591 + $0x4] sm:$0xf]
        %v594 = vld [vmem:[%s591 + $0x8] sm:$0xf]
        %v595 = vld [vmem:[%s591 + $0xc] sm:$0xf]
        %s596 = scalar_lea.vmem [#allocation7], 5
        %v597 = vld [vmem:[%s596] sm:$0x1]
        %v599 = vlaneseq
        %v600 = vshrl.u32 %v599, 7
        %v601 = vsub.s32 0, %v600
        %v602 = vrot.slane %v597, %v601
        %v608 = vunpack.c.l.b16 %v592
        %v609 = vunpack.c.l.b16 %v593
        %v610 = vunpack.c.l.b16 %v594
        %v611 = vunpack.c.l.b16 %v595
        %v612 = vpack.c.b16 %v609, %v608
        %v613 = vpack.c.b16 %v611, %v610
        %616 = vmatprep.subr.bf16.mxu0 0
        %617 = vmatpush1.bf16.msra.mxu0 %v612
        %618 = vmatprep.subr.bf16.mxu0 0
        %619 = vmatpush1.bf16.msra.mxu0 %v613
        %620 = vmatprep.subr.bf16.mxu0 0
        %621 = vmatpush1.bf16.msra.mxu0 0
        %622 = vmatprep.subr.bf16.mxu0 0
        %623 = vmatpush1.bf16.msra.mxu0 0
        %624 = vmatprep.subr.bf16.mxu0 0
        %625 = vmatpush1.bf16.msra.mxu0 0
        %626 = vmatprep.subr.bf16.mxu0 0
        %627 = vmatpush1.bf16.msra.mxu0 0
        %628 = vmatprep.subr.bf16.mxu0 0
        %629 = vmatpush1.bf16.msra.mxu0 0
        %630 = vmatprep.subr.bf16.mxu0 0
        %631 = vmatpush1.bf16.msra.mxu0 0
        %632 = vmatprep.subr.bf16.mxu0 0
        %633 = vmatpush1.bf16.msra.mxu0 0
        %634 = vmatprep.subr.bf16.mxu0 0
        %635 = vmatpush1.bf16.msra.mxu0 0
        %636 = vmatprep.subr.bf16.mxu0 0
        %637 = vmatpush1.bf16.msra.mxu0 0
        %638 = vmatprep.subr.bf16.mxu0 0
        %639 = vmatpush1.bf16.msra.mxu0 0
        %640 = vmatprep.subr.bf16.mxu0 0
        %641 = vmatpush1.bf16.msra.mxu0 0
        %642 = vmatprep.subr.bf16.mxu0 0
        %643 = vmatpush1.bf16.msra.mxu0 0
        %644 = vmatprep.subr.bf16.mxu0 0
        %645 = vmatpush1.bf16.msra.mxu0 0
        %646 = vmatprep.subr.bf16.mxu0 0
        %647 = vmatpush1.bf16.msra.mxu0 0
        %648 = vmatprep.mubr.bf16.mxu0 0
        %649 = vmatmul.mubr.bf16.gmra.mrb[0].mxu0 %v243
        %v650 = vpop.f32.mrb[0].mxu0
        %v651 = vadd.f32 %v602, %v650
        %v652 = vpop.f32.mrb[0].mxu0
        %v653 = vpop.f32.mrb[0].mxu0
        %v654 = vpop.f32.mrb[0].mxu0
        %655 = vdwg.mxu0
        %v656 = vpack.c.bf16 %v651, %v651
        %s657 = scalar_lea.vmem [#allocation5], 144
        %v658 = vld [vmem:[%s657] sm:$0xf]
        %v659 = vld [vmem:[%s657 + $0x4] sm:$0xf]
        %v660 = vld [vmem:[%s657 + $0x8] sm:$0xf]
        %v661 = vld [vmem:[%s657 + $0xc] sm:$0xf]
        %s662 = scalar_lea.vmem [#allocation7], 9
        %v663 = vld [vmem:[%s662] sm:$0x1]
        %v665 = vlaneseq
        %v666 = vshrl.u32 %v665, 7
        %v667 = vsub.s32 0, %v666
        %v668 = vrot.slane %v663, %v667
        %v674 = vunpack.c.l.b16 %v658
        %v675 = vunpack.c.l.b16 %v659
        %v676 = vunpack.c.l.b16 %v660
        %v677 = vunpack.c.l.b16 %v661
        %v678 = vpack.c.b16 %v675, %v674
        %v679 = vpack.c.b16 %v677, %v676
        %682 = vmatprep.subr.bf16.mxu0 0
        %683 = vmatpush1.bf16.msra.mxu0 %v678
        %684 = vmatprep.subr.bf16.mxu0 0
        %685 = vmatpush1.bf16.msra.mxu0 %v679
        %686 = vmatprep.subr.bf16.mxu0 0
        %687 = vmatpush1.bf16.msra.mxu0 0
        %688 = vmatprep.subr.bf16.mxu0 0
        %689 = vmatpush1.bf16.msra.mxu0 0
        %690 = vmatprep.subr.bf16.mxu0 0
        %691 = vmatpush1.bf16.msra.mxu0 0
        %692 = vmatprep.subr.bf16.mxu0 0
        %693 = vmatpush1.bf16.msra.mxu0 0
        %694 = vmatprep.subr.bf16.mxu0 0
        %695 = vmatpush1.bf16.msra.mxu0 0
        %696 = vmatprep.subr.bf16.mxu0 0
        %697 = vmatpush1.bf16.msra.mxu0 0
        %698 = vmatprep.subr.bf16.mxu0 0
        %699 = vmatpush1.bf16.msra.mxu0 0
        %700 = vmatprep.subr.bf16.mxu0 0
        %701 = vmatpush1.bf16.msra.mxu0 0
        %702 = vmatprep.subr.bf16.mxu0 0
        %703 = vmatpush1.bf16.msra.mxu0 0
        %704 = vmatprep.subr.bf16.mxu0 0
        %705 = vmatpush1.bf16.msra.mxu0 0
        %706 = vmatprep.subr.bf16.mxu0 0
        %707 = vmatpush1.bf16.msra.mxu0 0
        %708 = vmatprep.subr.bf16.mxu0 0
        %709 = vmatpush1.bf16.msra.mxu0 0
        %710 = vmatprep.subr.bf16.mxu0 0
        %711 = vmatpush1.bf16.msra.mxu0 0
        %712 = vmatprep.subr.bf16.mxu0 0
        %713 = vmatpush1.bf16.msra.mxu0 0
        %714 = vmatprep.mubr.bf16.mxu0 0
        %715 = vmatmul.mubr.bf16.gmra.mrb[0].mxu0 %v243
        %v716 = vpop.f32.mrb[0].mxu0
        %v717 = vadd.f32 %v668, %v716
        %v718 = vpop.f32.mrb[0].mxu0
        %v719 = vpop.f32.mrb[0].mxu0
        %v720 = vpop.f32.mrb[0].mxu0
        %721 = vdwg.mxu0
        %v722 = vpack.c.bf16 %v717, %v717
        %v724 = vsel %vm418, %v590, 0
        %v727 = vsel %vm418, %v656, 0
        %729 = vmatprep.subr.bf16.mxu0 0
        %730 = vmatpush1.bf16.xpose.msra.mxu0 %v727
        %731 = vmatprep.subr.bf16.mxu0 0
        %732 = vmatpush1.bf16.xpose.msra.mxu0 0
        %733 = vmatprep.subr.bf16.mxu0 0
        %734 = vmatpush1.bf16.xpose.msra.mxu0 0
        %735 = vmatprep.subr.bf16.mxu0 0
        %736 = vmatpush1.bf16.xpose.msra.mxu0 0
        %737 = vmatprep.subr.bf16.mxu0 0
        %738 = vmatpush1.bf16.xpose.msra.mxu0 0
        %739 = vmatprep.subr.bf16.mxu0 0
        %740 = vmatpush1.bf16.xpose.msra.mxu0 0
        %741 = vmatprep.subr.bf16.mxu0 0
        %742 = vmatpush1.bf16.xpose.msra.mxu0 0
        %743 = vmatprep.subr.bf16.mxu0 0
        %744 = vmatpush1.bf16.xpose.msra.mxu0 0
        %745 = vmatprep.subr.bf16.mxu0 0
        %746 = vmatpush1.bf16.xpose.msra.mxu0 0
        %747 = vmatprep.subr.bf16.mxu0 0
        %748 = vmatpush1.bf16.xpose.msra.mxu0 0
        %749 = vmatprep.subr.bf16.mxu0 0
        %750 = vmatpush1.bf16.xpose.msra.mxu0 0
        %751 = vmatprep.subr.bf16.mxu0 0
        %752 = vmatpush1.bf16.xpose.msra.mxu0 0
        %753 = vmatprep.subr.bf16.mxu0 0
        %754 = vmatpush1.bf16.xpose.msra.mxu0 0
        %755 = vmatprep.subr.bf16.mxu0 0
        %756 = vmatpush1.bf16.xpose.msra.mxu0 0
        %757 = vmatprep.subr.bf16.mxu0 0
        %758 = vmatpush1.bf16.xpose.msra.mxu0 0
        %759 = vmatprep.subr.bf16.mxu0 0
        %760 = vmatpush1.bf16.xpose.msra.mxu0 0
        %761 = vmatprep.mubr.bf16.mxu0 0
        %762 = vmatmul.mubr.bf16.gmra.mrb[0].mxu0 %v724
        %v763 = vpop.f32.mrb[0].mxu0
        %v764 = vadd.f32 0.0, %v763
        %v765 = vpop.f32.mrb[0].mxu0
        %v766 = vpop.f32.mrb[0].mxu0
        %v767 = vpop.f32.mrb[0].mxu0
        %768 = vdwg.mxu0
        %v769 = vsel %vm418, %v764, -inf
        %770 = vmax.xlane.f32.xlu0 %v769
        %v771 = vpop.xlane.xlu0 %770
        %v772 = vsub.f32 %v764, %v771
        %v773 = vmul.f32 %v772, 1.442695
        %v774 = vpow.pop %v773
        %v775 = vsel %vm418, %v774, 0.0
        %776 = vadd.xlane.f32.xlu0 %v775
        %v777 = vpop.xlane.xlu0 %776
        %v778 = vpack.c.bf16 %v774, %v774
        %v780 = vsel %vm418, %v778, 0
        %v783 = vsel %vm478, %v722, 0
        %785 = vmatprep.subr.bf16.mxu0 0
        %786 = vmatpush1.bf16.msra.mxu0 %v783
        %787 = vmatprep.subr.bf16.mxu0 0
        %788 = vmatpush1.bf16.msra.mxu0 0
        %789 = vmatprep.subr.bf16.mxu0 0
        %790 = vmatpush1.bf16.msra.mxu0 0
        %791 = vmatprep.subr.bf16.mxu0 0
        %792 = vmatpush1.bf16.msra.mxu0 0
        %793 = vmatprep.subr.bf16.mxu0 0
        %794 = vmatpush1.bf16.msra.mxu0 0
        %795 = vmatprep.subr.bf16.mxu0 0
        %796 = vmatpush1.bf16.msra.mxu0 0
        %797 = vmatprep.subr.bf16.mxu0 0
        %798 = vmatpush1.bf16.msra.mxu0 0
        %799 = vmatprep.subr.bf16.mxu0 0
        %800 = vmatpush1.bf16.msra.mxu0 0
        %801 = vmatprep.subr.bf16.mxu0 0
        %802 = vmatpush1.bf16.msra.mxu0 0
        %803 = vmatprep.subr.bf16.mxu0 0
        %804 = vmatpush1.bf16.msra.mxu0 0
        %805 = vmatprep.subr.bf16.mxu0 0
        %806 = vmatpush1.bf16.msra.mxu0 0
        %807 = vmatprep.subr.bf16.mxu0 0
        %808 = vmatpush1.bf16.msra.mxu0 0
        %809 = vmatprep.subr.bf16.mxu0 0
        %810 = vmatpush1.bf16.msra.mxu0 0
        %811 = vmatprep.subr.bf16.mxu0 0
        %812 = vmatpush1.bf16.msra.mxu0 0
        %813 = vmatprep.subr.bf16.mxu0 0
        %814 = vmatpush1.bf16.msra.mxu0 0
        %815 = vmatprep.subr.bf16.mxu0 0
        %816 = vmatpush1.bf16.msra.mxu0 0
        %817 = vmatprep.mubr.bf16.mxu0 0
        %818 = vmatmul.mubr.bf16.gmra.mrb[0].mxu0 %v780
        %v819 = vpop.f32.mrb[0].mxu0
        %v820 = vadd.f32 0.0, %v819
        %v821 = vpop.f32.mrb[0].mxu0
        %v822 = vpop.f32.mrb[0].mxu0
        %v823 = vpop.f32.mrb[0].mxu0
        %824 = vdwg.mxu0
        %v825 = vrcp.pop %v777
        %v826 = vmul.f32 %v820, %v825
        %828 = vrot.lane.b32.xlu0 %v826, 8
        %v829 = vpop.permute.xlu0 %828
        %vm831 = vcmask 130112
        %832 = vst.msk [vmem:[%s214] sm:$0xff] %vm831, %v829
        %s833 = scalar_lea.vmem [#allocation5], 32
        %v834 = vld [vmem:[%s833] sm:$0xf]
        %v835 = vld [vmem:[%s833 + $0x4] sm:$0xf]
        %v836 = vld [vmem:[%s833 + $0x8] sm:$0xf]
        %v837 = vld [vmem:[%s833 + $0xc] sm:$0xf]
        %s838 = scalar_lea.vmem [#allocation7], 2
        %v839 = vld [vmem:[%s838] sm:$0x1]
        %v841 = vlaneseq
        %v842 = vshrl.u32 %v841, 7
        %v843 = vsub.s32 0, %v842
        %v844 = vrot.slane %v839, %v843
        %v850 = vunpack.c.l.b16 %v834
        %v851 = vunpack.c.l.b16 %v835
        %v852 = vunpack.c.l.b16 %v836
        %v853 = vunpack.c.l.b16 %v837
        %v854 = vpack.c.b16 %v851, %v850
        %v855 = vpack.c.b16 %v853, %v852
        %858 = vmatprep.subr.bf16.mxu0 0
        %859 = vmatpush1.bf16.msra.mxu0 %v854
        %860 = vmatprep.subr.bf16.mxu0 0
        %861 = vmatpush1.bf16.msra.mxu0 %v855
        %862 = vmatprep.subr.bf16.mxu0 0
        %863 = vmatpush1.bf16.msra.mxu0 0
        %864 = vmatprep.subr.bf16.mxu0 0
        %865 = vmatpush1.bf16.msra.mxu0 0
        %866 = vmatprep.subr.bf16.mxu0 0
        %867 = vmatpush1.bf16.msra.mxu0 0
        %868 = vmatprep.subr.bf16.mxu0 0
        %869 = vmatpush1.bf16.msra.mxu0 0
        %870 = vmatprep.subr.bf16.mxu0 0
        %871 = vmatpush1.bf16.msra.mxu0 0
        %872 = vmatprep.subr.bf16.mxu0 0
        %873 = vmatpush1.bf16.msra.mxu0 0
        %874 = vmatprep.subr.bf16.mxu0 0
        %875 = vmatpush1.bf16.msra.mxu0 0
        %876 = vmatprep.subr.bf16.mxu0 0
        %877 = vmatpush1.bf16.msra.mxu0 0
        %878 = vmatprep.subr.bf16.mxu0 0
        %879 = vmatpush1.bf16.msra.mxu0 0
        %880 = vmatprep.subr.bf16.mxu0 0
        %881 = vmatpush1.bf16.msra.mxu0 0
        %882 = vmatprep.subr.bf16.mxu0 0
        %883 = vmatpush1.bf16.msra.mxu0 0
        %884 = vmatprep.subr.bf16.mxu0 0
        %885 = vmatpush1.bf16.msra.mxu0 0
        %886 = vmatprep.subr.bf16.mxu0 0
        %887 = vmatpush1.bf16.msra.mxu0 0
        %888 = vmatprep.subr.bf16.mxu0 0
        %889 = vmatpush1.bf16.msra.mxu0 0
        %890 = vmatprep.mubr.bf16.mxu0 0
        %891 = vmatmul.mubr.bf16.gmra.mrb[0].mxu0 %v243
        %v892 = vpop.f32.mrb[0].mxu0
        %v893 = vadd.f32 %v844, %v892
        %v894 = vpop.f32.mrb[0].mxu0
        %v895 = vpop.f32.mrb[0].mxu0
        %v896 = vpop.f32.mrb[0].mxu0
        %897 = vdwg.mxu0
        %v898 = vpack.c.bf16 %v893, %v893
        %s899 = scalar_lea.vmem [#allocation5], 96
        %v900 = vld [vmem:[%s899] sm:$0xf]
        %v901 = vld [vmem:[%s899 + $0x4] sm:$0xf]
        %v902 = vld [vmem:[%s899 + $0x8] sm:$0xf]
        %v903 = vld [vmem:[%s899 + $0xc] sm:$0xf]
        %s904 = scalar_lea.vmem [#allocation7], 6
        %v905 = vld [vmem:[%s904] sm:$0x1]
        %v907 = vlaneseq
        %v908 = vshrl.u32 %v907, 7
        %v909 = vsub.s32 0, %v908
        %v910 = vrot.slane %v905, %v909
        %v916 = vunpack.c.l.b16 %v900
        %v917 = vunpack.c.l.b16 %v901
        %v918 = vunpack.c.l.b16 %v902
        %v919 = vunpack.c.l.b16 %v903
        %v920 = vpack.c.b16 %v917, %v916
        %v921 = vpack.c.b16 %v919, %v918
        %924 = vmatprep.subr.bf16.mxu0 0
        %925 = vmatpush1.bf16.msra.mxu0 %v920
        %926 = vmatprep.subr.bf16.mxu0 0
        %927 = vmatpush1.bf16.msra.mxu0 %v921
        %928 = vmatprep.subr.bf16.mxu0 0
        %929 = vmatpush1.bf16.msra.mxu0 0
        %930 = vmatprep.subr.bf16.mxu0 0
        %931 = vmatpush1.bf16.msra.mxu0 0
        %932 = vmatprep.subr.bf16.mxu0 0
        %933 = vmatpush1.bf16.msra.mxu0 0
        %934 = vmatprep.subr.bf16.mxu0 0
        %935 = vmatpush1.bf16.msra.mxu0 0
        %936 = vmatprep.subr.bf16.mxu0 0
        %937 = vmatpush1.bf16.msra.mxu0 0
        %938 = vmatprep.subr.bf16.mxu0 0
        %939 = vmatpush1.bf16.msra.mxu0 0
        %940 = vmatprep.subr.bf16.mxu0 0
        %941 = vmatpush1.bf16.msra.mxu0 0
        %942 = vmatprep.subr.bf16.mxu0 0
        %943 = vmatpush1.bf16.msra.mxu0 0
        %944 = vmatprep.subr.bf16.mxu0 0
        %945 = vmatpush1.bf16.msra.mxu0 0
        %946 = vmatprep.subr.bf16.mxu0 0
        %947 = vmatpush1.bf16.msra.mxu0 0
        %948 = vmatprep.subr.bf16.mxu0 0
        %949 = vmatpush1.bf16.msra.mxu0 0
        %950 = vmatprep.subr.bf16.mxu0 0
        %951 = vmatpush1.bf16.msra.mxu0 0
        %952 = vmatprep.subr.bf16.mxu0 0
        %953 = vmatpush1.bf16.msra.mxu0 0
        %954 = vmatprep.subr.bf16.mxu0 0
        %955 = vmatpush1.bf16.msra.mxu0 0
        %956 = vmatprep.mubr.bf16.mxu0 0
        %957 = vmatmul.mubr.bf16.gmra.mrb[0].mxu0 %v243
        %v958 = vpop.f32.mrb[0].mxu0
        %v959 = vadd.f32 %v910, %v958
        %v960 = vpop.f32.mrb[0].mxu0
        %v961 = vpop.f32.mrb[0].mxu0
        %v962 = vpop.f32.mrb[0].mxu0
        %963 = vdwg.mxu0
        %v964 = vpack.c.bf16 %v959, %v959
        %s965 = scalar_lea.vmem [#allocation5], 160
        %v966 = vld [vmem:[%s965] sm:$0xf]
        %v967 = vld [vmem:[%s965 + $0x4] sm:$0xf]
        %v968 = vld [vmem:[%s965 + $0x8] sm:$0xf]
        %v969 = vld [vmem:[%s965 + $0xc] sm:$0xf]
        %s970 = scalar_lea.vmem [#allocation7], 10
        %v971 = vld [vmem:[%s970] sm:$0x1]
        %v973 = vlaneseq
        %v974 = vshrl.u32 %v973, 7
        %v975 = vsub.s32 0, %v974
        %v976 = vrot.slane %v971, %v975
        %v982 = vunpack.c.l.b16 %v966
        %v983 = vunpack.c.l.b16 %v967
        %v984 = vunpack.c.l.b16 %v968
        %v985 = vunpack.c.l.b16 %v969
        %v986 = vpack.c.b16 %v983, %v982
        %v987 = vpack.c.b16 %v985, %v984
        %990 = vmatprep.subr.bf16.mxu0 0
        %991 = vmatpush1.bf16.msra.mxu0 %v986
        %992 = vmatprep.subr.bf16.mxu0 0
        %993 = vmatpush1.bf16.msra.mxu0 %v987
        %994 = vmatprep.subr.bf16.mxu0 0
        %995 = vmatpush1.bf16.msra.mxu0 0
        %996 = vmatprep.subr.bf16.mxu0 0
        %997 = vmatpush1.bf16.msra.mxu0 0
        %998 = vmatprep.subr.bf16.mxu0 0
        %999 = vmatpush1.bf16.msra.mxu0 0
        %1000 = vmatprep.subr.bf16.mxu0 0
        %1001 = vmatpush1.bf16.msra.mxu0 0
        %1002 = vmatprep.subr.bf16.mxu0 0
        %1003 = vmatpush1.bf16.msra.mxu0 0
        %1004 = vmatprep.subr.bf16.mxu0 0
        %1005 = vmatpush1.bf16.msra.mxu0 0
        %1006 = vmatprep.subr.bf16.mxu0 0
        %1007 = vmatpush1.bf16.msra.mxu0 0
        %1008 = vmatprep.subr.bf16.mxu0 0
        %1009 = vmatpush1.bf16.msra.mxu0 0
        %1010 = vmatprep.subr.bf16.mxu0 0
        %1011 = vmatpush1.bf16.msra.mxu0 0
        %1012 = vmatprep.subr.bf16.mxu0 0
        %1013 = vmatpush1.bf16.msra.mxu0 0
        %1014 = vmatprep.subr.bf16.mxu0 0
        %1015 = vmatpush1.bf16.msra.mxu0 0
        %1016 = vmatprep.subr.bf16.mxu0 0
        %1017 = vmatpush1.bf16.msra.mxu0 0
        %1018 = vmatprep.subr.bf16.mxu0 0
        %1019 = vmatpush1.bf16.msra.mxu0 0
        %1020 = vmatprep.subr.bf16.mxu0 0
        %1021 = vmatpush1.bf16.msra.mxu0 0
        %1022 = vmatprep.mubr.bf16.mxu0 0
        %1023 = vmatmul.mubr.bf16.gmra.mrb[0].mxu0 %v243
        %v1024 = vpop.f32.mrb[0].mxu0
        %v1025 = vadd.f32 %v976, %v1024
        %v1026 = vpop.f32.mrb[0].mxu0
        %v1027 = vpop.f32.mrb[0].mxu0
        %v1028 = vpop.f32.mrb[0].mxu0
        %1029 = vdwg.mxu0
        %v1030 = vpack.c.bf16 %v1025, %v1025
        %v1032 = vsel %vm418, %v898, 0
        %v1035 = vsel %vm418, %v964, 0
        %1037 = vmatprep.subr.bf16.mxu0 0
        %1038 = vmatpush1.bf16.xpose.msra.mxu0 %v1035
        %1039 = vmatprep.subr.bf16.mxu0 0
        %1040 = vmatpush1.bf16.xpose.msra.mxu0 0
        %1041 = vmatprep.subr.bf16.mxu0 0
        %1042 = vmatpush1.bf16.xpose.msra.mxu0 0
        %1043 = vmatprep.subr.bf16.mxu0 0
        %1044 = vmatpush1.bf16.xpose.msra.mxu0 0
        %1045 = vmatprep.subr.bf16.mxu0 0
        %1046 = vmatpush1.bf16.xpose.msra.mxu0 0
        %1047 = vmatprep.subr.bf16.mxu0 0
        %1048 = vmatpush1.bf16.xpose.msra.mxu0 0
        %1049 = vmatprep.subr.bf16.mxu0 0
        %1050 = vmatpush1.bf16.xpose.msra.mxu0 0
        %1051 = vmatprep.subr.bf16.mxu0 0
        %1052 = vmatpush1.bf16.xpose.msra.mxu0 0
        %1053 = vmatprep.subr.bf16.mxu0 0
        %1054 = vmatpush1.bf16.xpose.msra.mxu0 0
        %1055 = vmatprep.subr.bf16.mxu0 0
        %1056 = vmatpush1.bf16.xpose.msra.mxu0 0
        %1057 = vmatprep.subr.bf16.mxu0 0
        %1058 = vmatpush1.bf16.xpose.msra.mxu0 0
        %1059 = vmatprep.subr.bf16.mxu0 0
        %1060 = vmatpush1.bf16.xpose.msra.mxu0 0
        %1061 = vmatprep.subr.bf16.mxu0 0
        %1062 = vmatpush1.bf16.xpose.msra.mxu0 0
        %1063 = vmatprep.subr.bf16.mxu0 0
        %1064 = vmatpush1.bf16.xpose.msra.mxu0 0
        %1065 = vmatprep.subr.bf16.mxu0 0
        %1066 = vmatpush1.bf16.xpose.msra.mxu0 0
        %1067 = vmatprep.subr.bf16.mxu0 0
        %1068 = vmatpush1.bf16.xpose.msra.mxu0 0
        %1069 = vmatprep.mubr.bf16.mxu0 0
        %1070 = vmatmul.mubr.bf16.gmra.mrb[0].mxu0 %v1032
        %v1071 = vpop.f32.mrb[0].mxu0
        %v1072 = vadd.f32 0.0, %v1071
        %v1073 = vpop.f32.mrb[0].mxu0
        %v1074 = vpop.f32.mrb[0].mxu0
        %v1075 = vpop.f32.mrb[0].mxu0
        %1076 = vdwg.mxu0
        %v1077 = vsel %vm418, %v1072, -inf
        %1078 = vmax.xlane.f32.xlu0 %v1077
        %v1079 = vpop.xlane.xlu0 %1078
        %v1080 = vsub.f32 %v1072, %v1079
        %v1081 = vmul.f32 %v1080, 1.442695
        %v1082 = vpow.pop %v1081
        %v1083 = vsel %vm418, %v1082, 0.0
        %1084 = vadd.xlane.f32.xlu0 %v1083
        %v1085 = vpop.xlane.xlu0 %1084
        %v1086 = vpack.c.bf16 %v1082, %v1082
        %v1088 = vsel %vm418, %v1086, 0
        %v1091 = vsel %vm478, %v1030, 0
        %1093 = vmatprep.subr.bf16.mxu0 0
        %1094 = vmatpush1.bf16.msra.mxu0 %v1091
        %1095 = vmatprep.subr.bf16.mxu0 0
        %1096 = vmatpush1.bf16.msra.mxu0 0
        %1097 = vmatprep.subr.bf16.mxu0 0
        %1098 = vmatpush1.bf16.msra.mxu0 0
        %1099 = vmatprep.subr.bf16.mxu0 0
        %1100 = vmatpush1.bf16.msra.mxu0 0
        %1101 = vmatprep.subr.bf16.mxu0 0
        %1102 = vmatpush1.bf16.msra.mxu0 0
        %1103 = vmatprep.subr.bf16.mxu0 0
        %1104 = vmatpush1.bf16.msra.mxu0 0
        %1105 = vmatprep.subr.bf16.mxu0 0
        %1106 = vmatpush1.bf16.msra.mxu0 0
        %1107 = vmatprep.subr.bf16.mxu0 0
        %1108 = vmatpush1.bf16.msra.mxu0 0
        %1109 = vmatprep.subr.bf16.mxu0 0
        %1110 = vmatpush1.bf16.msra.mxu0 0
        %1111 = vmatprep.subr.bf16.mxu0 0
        %1112 = vmatpush1.bf16.msra.mxu0 0
        %1113 = vmatprep.subr.bf16.mxu0 0
        %1114 = vmatpush1.bf16.msra.mxu0 0
        %1115 = vmatprep.subr.bf16.mxu0 0
        %1116 = vmatpush1.bf16.msra.mxu0 0
        %1117 = vmatprep.subr.bf16.mxu0 0
        %1118 = vmatpush1.bf16.msra.mxu0 0
        %1119 = vmatprep.subr.bf16.mxu0 0
        %1120 = vmatpush1.bf16.msra.mxu0 0
        %1121 = vmatprep.subr.bf16.mxu0 0
        %1122 = vmatpush1.bf16.msra.mxu0 0
        %1123 = vmatprep.subr.bf16.mxu0 0
        %1124 = vmatpush1.bf16.msra.mxu0 0
        %1125 = vmatprep.mubr.bf16.mxu0 0
        %1126 = vmatmul.mubr.bf16.gmra.mrb[0].mxu0 %v1088
        %v1127 = vpop.f32.mrb[0].mxu0
        %v1128 = vadd.f32 0.0, %v1127
        %v1129 = vpop.f32.mrb[0].mxu0
        %v1130 = vpop.f32.mrb[0].mxu0
        %v1131 = vpop.f32.mrb[0].mxu0
        %1132 = vdwg.mxu0
        %v1133 = vrcp.pop %v1085
        %v1134 = vmul.f32 %v1128, %v1133
        %1136 = vrot.lane.b32.xlu0 %v1134, 16
        %v1137 = vpop.permute.xlu0 %1136
        %vm1139 = vcmask 195712
        %1140 = vst.msk [vmem:[%s214] sm:$0xff] %vm1139, %v1137
        %s1141 = scalar_lea.vmem [#allocation5], 48
        %v1142 = vld [vmem:[%s1141] sm:$0xf]
        %v1143 = vld [vmem:[%s1141 + $0x4] sm:$0xf]
        %v1144 = vld [vmem:[%s1141 + $0x8] sm:$0xf]
        %v1145 = vld [vmem:[%s1141 + $0xc] sm:$0xf]
        %s1146 = scalar_lea.vmem [#allocation7], 3
        %v1147 = vld [vmem:[%s1146] sm:$0x1]
        %v1149 = vlaneseq
        %v1150 = vshrl.u32 %v1149, 7
        %v1151 = vsub.s32 0, %v1150
        %v1152 = vrot.slane %v1147, %v1151
        %v1158 = vunpack.c.l.b16 %v1142
        %v1159 = vunpack.c.l.b16 %v1143
        %v1160 = vunpack.c.l.b16 %v1144
        %v1161 = vunpack.c.l.b16 %v1145
        %v1162 = vpack.c.b16 %v1159, %v1158
        %v1163 = vpack.c.b16 %v1161, %v1160
        %1166 = vmatprep.subr.bf16.mxu0 0
        %1167 = vmatpush1.bf16.msra.mxu0 %v1162
        %1168 = vmatprep.subr.bf16.mxu0 0
        %1169 = vmatpush1.bf16.msra.mxu0 %v1163
        %1170 = vmatprep.subr.bf16.mxu0 0
        %1171 = vmatpush1.bf16.msra.mxu0 0
        %1172 = vmatprep.subr.bf16.mxu0 0
        %1173 = vmatpush1.bf16.msra.mxu0 0
        %1174 = vmatprep.subr.bf16.mxu0 0
        %1175 = vmatpush1.bf16.msra.mxu0 0
        %1176 = vmatprep.subr.bf16.mxu0 0
        %1177 = vmatpush1.bf16.msra.mxu0 0
        %1178 = vmatprep.subr.bf16.mxu0 0
        %1179 = vmatpush1.bf16.msra.mxu0 0
        %1180 = vmatprep.subr.bf16.mxu0 0
        %1181 = vmatpush1.bf16.msra.mxu0 0
        %1182 = vmatprep.subr.bf16.mxu0 0
        %1183 = vmatpush1.bf16.msra.mxu0 0
        %1184 = vmatprep.subr.bf16.mxu0 0
        %1185 = vmatpush1.bf16.msra.mxu0 0
        %1186 = vmatprep.subr.bf16.mxu0 0
        %1187 = vmatpush1.bf16.msra.mxu0 0
        %1188 = vmatprep.subr.bf16.mxu0 0
        %1189 = vmatpush1.bf16.msra.mxu0 0
        %1190 = vmatprep.subr.bf16.mxu0 0
        %1191 = vmatpush1.bf16.msra.mxu0 0
        %1192 = vmatprep.subr.bf16.mxu0 0
        %1193 = vmatpush1.bf16.msra.mxu0 0
        %1194 = vmatprep.subr.bf16.mxu0 0
        %1195 = vmatpush1.bf16.msra.mxu0 0
        %1196 = vmatprep.subr.bf16.mxu0 0
        %1197 = vmatpush1.bf16.msra.mxu0 0
        %1198 = vmatprep.mubr.bf16.mxu0 0
        %1199 = vmatmul.mubr.bf16.gmra.mrb[0].mxu0 %v243
        %v1200 = vpop.f32.mrb[0].mxu0
        %v1201 = vadd.f32 %v1152, %v1200
        %v1202 = vpop.f32.mrb[0].mxu0
        %v1203 = vpop.f32.mrb[0].mxu0
        %v1204 = vpop.f32.mrb[0].mxu0
        %1205 = vdwg.mxu0
        %v1206 = vpack.c.bf16 %v1201, %v1201
        %s1207 = scalar_lea.vmem [#allocation5], 112
        %v1208 = vld [vmem:[%s1207] sm:$0xf]
        %v1209 = vld [vmem:[%s1207 + $0x4] sm:$0xf]
        %v1210 = vld [vmem:[%s1207 + $0x8] sm:$0xf]
        %v1211 = vld [vmem:[%s1207 + $0xc] sm:$0xf]
        %s1212 = scalar_lea.vmem [#allocation7], 7
        %v1213 = vld [vmem:[%s1212] sm:$0x1]
        %v1215 = vlaneseq
        %v1216 = vshrl.u32 %v1215, 7
        %v1217 = vsub.s32 0, %v1216
        %v1218 = vrot.slane %v1213, %v1217
        %v1224 = vunpack.c.l.b16 %v1208
        %v1225 = vunpack.c.l.b16 %v1209
        %v1226 = vunpack.c.l.b16 %v1210
        %v1227 = vunpack.c.l.b16 %v1211
        %v1228 = vpack.c.b16 %v1225, %v1224
        %v1229 = vpack.c.b16 %v1227, %v1226
        %1232 = vmatprep.subr.bf16.mxu0 0
        %1233 = vmatpush1.bf16.msra.mxu0 %v1228
        %1234 = vmatprep.subr.bf16.mxu0 0
        %1235 = vmatpush1.bf16.msra.mxu0 %v1229
        %1236 = vmatprep.subr.bf16.mxu0 0
        %1237 = vmatpush1.bf16.msra.mxu0 0
        %1238 = vmatprep.subr.bf16.mxu0 0
        %1239 = vmatpush1.bf16.msra.mxu0 0
        %1240 = vmatprep.subr.bf16.mxu0 0
        %1241 = vmatpush1.bf16.msra.mxu0 0
        %1242 = vmatprep.subr.bf16.mxu0 0
        %1243 = vmatpush1.bf16.msra.mxu0 0
        %1244 = vmatprep.subr.bf16.mxu0 0
        %1245 = vmatpush1.bf16.msra.mxu0 0
        %1246 = vmatprep.subr.bf16.mxu0 0
        %1247 = vmatpush1.bf16.msra.mxu0 0
        %1248 = vmatprep.subr.bf16.mxu0 0
        %1249 = vmatpush1.bf16.msra.mxu0 0
        %1250 = vmatprep.subr.bf16.mxu0 0
        %1251 = vmatpush1.bf16.msra.mxu0 0
        %1252 = vmatprep.subr.bf16.mxu0 0
        %1253 = vmatpush1.bf16.msra.mxu0 0
        %1254 = vmatprep.subr.bf16.mxu0 0
        %1255 = vmatpush1.bf16.msra.mxu0 0
        %1256 = vmatprep.subr.bf16.mxu0 0
        %1257 = vmatpush1.bf16.msra.mxu0 0
        %1258 = vmatprep.subr.bf16.mxu0 0
        %1259 = vmatpush1.bf16.msra.mxu0 0
        %1260 = vmatprep.subr.bf16.mxu0 0
        %1261 = vmatpush1.bf16.msra.mxu0 0
        %1262 = vmatprep.subr.bf16.mxu0 0
        %1263 = vmatpush1.bf16.msra.mxu0 0
        %1264 = vmatprep.mubr.bf16.mxu0 0
        %1265 = vmatmul.mubr.bf16.gmra.mrb[0].mxu0 %v243
        %v1266 = vpop.f32.mrb[0].mxu0
        %v1267 = vadd.f32 %v1218, %v1266
        %v1268 = vpop.f32.mrb[0].mxu0
        %v1269 = vpop.f32.mrb[0].mxu0
        %v1270 = vpop.f32.mrb[0].mxu0
        %1271 = vdwg.mxu0
        %v1272 = vpack.c.bf16 %v1267, %v1267
        %s1273 = scalar_lea.vmem [#allocation5], 176
        %v1274 = vld [vmem:[%s1273] sm:$0xf]
        %v1275 = vld [vmem:[%s1273 + $0x4] sm:$0xf]
        %v1276 = vld [vmem:[%s1273 + $0x8] sm:$0xf]
        %v1277 = vld [vmem:[%s1273 + $0xc] sm:$0xf]
        %s1278 = scalar_lea.vmem [#allocation7], 11
        %v1279 = vld [vmem:[%s1278] sm:$0x1]
        %v1281 = vlaneseq
        %v1282 = vshrl.u32 %v1281, 7
        %v1283 = vsub.s32 0, %v1282
        %v1284 = vrot.slane %v1279, %v1283
        %v1290 = vunpack.c.l.b16 %v1274
        %v1291 = vunpack.c.l.b16 %v1275
        %v1292 = vunpack.c.l.b16 %v1276
        %v1293 = vunpack.c.l.b16 %v1277
        %v1294 = vpack.c.b16 %v1291, %v1290
        %v1295 = vpack.c.b16 %v1293, %v1292
        %1298 = vmatprep.subr.bf16.mxu0 0
        %1299 = vmatpush1.bf16.msra.mxu0 %v1294
        %1300 = vmatprep.subr.bf16.mxu0 0
        %1301 = vmatpush1.bf16.msra.mxu0 %v1295
        %1302 = vmatprep.subr.bf16.mxu0 0
        %1303 = vmatpush1.bf16.msra.mxu0 0
        %1304 = vmatprep.subr.bf16.mxu0 0
        %1305 = vmatpush1.bf16.msra.mxu0 0
        %1306 = vmatprep.subr.bf16.mxu0 0
        %1307 = vmatpush1.bf16.msra.mxu0 0
        %1308 = vmatprep.subr.bf16.mxu0 0
        %1309 = vmatpush1.bf16.msra.mxu0 0
        %1310 = vmatprep.subr.bf16.mxu0 0
        %1311 = vmatpush1.bf16.msra.mxu0 0
        %1312 = vmatprep.subr.bf16.mxu0 0
        %1313 = vmatpush1.bf16.msra.mxu0 0
        %1314 = vmatprep.subr.bf16.mxu0 0
        %1315 = vmatpush1.bf16.msra.mxu0 0
        %1316 = vmatprep.subr.bf16.mxu0 0
        %1317 = vmatpush1.bf16.msra.mxu0 0
        %1318 = vmatprep.subr.bf16.mxu0 0
        %1319 = vmatpush1.bf16.msra.mxu0 0
        %1320 = vmatprep.subr.bf16.mxu0 0
        %1321 = vmatpush1.bf16.msra.mxu0 0
        %1322 = vmatprep.subr.bf16.mxu0 0
        %1323 = vmatpush1.bf16.msra.mxu0 0
        %1324 = vmatprep.subr.bf16.mxu0 0
        %1325 = vmatpush1.bf16.msra.mxu0 0
        %1326 = vmatprep.subr.bf16.mxu0 0
        %1327 = vmatpush1.bf16.msra.mxu0 0
        %1328 = vmatprep.subr.bf16.mxu0 0
        %1329 = vmatpush1.bf16.msra.mxu0 0
        %1330 = vmatprep.mubr.bf16.mxu0 0
        %1331 = vmatmul.mubr.bf16.gmra.mrb[0].mxu0 %v243
        %v1332 = vpop.f32.mrb[0].mxu0
        %v1333 = vadd.f32 %v1284, %v1332
        %v1334 = vpop.f32.mrb[0].mxu0
        %v1335 = vpop.f32.mrb[0].mxu0
        %v1336 = vpop.f32.mrb[0].mxu0
        %1337 = vdwg.mxu0
        %v1338 = vpack.c.bf16 %v1333, %v1333
        %v1340 = vsel %vm418, %v1206, 0
        %v1343 = vsel %vm418, %v1272, 0
        %1345 = vmatprep.subr.bf16.mxu0 0
        %1346 = vmatpush1.bf16.xpose.msra.mxu0 %v1343
        %1347 = vmatprep.subr.bf16.mxu0 0
        %1348 = vmatpush1.bf16.xpose.msra.mxu0 0
        %1349 = vmatprep.subr.bf16.mxu0 0
        %1350 = vmatpush1.bf16.xpose.msra.mxu0 0
        %1351 = vmatprep.subr.bf16.mxu0 0
        %1352 = vmatpush1.bf16.xpose.msra.mxu0 0
        %1353 = vmatprep.subr.bf16.mxu0 0
        %1354 = vmatpush1.bf16.xpose.msra.mxu0 0
        %1355 = vmatprep.subr.bf16.mxu0 0
        %1356 = vmatpush1.bf16.xpose.msra.mxu0 0
        %1357 = vmatprep.subr.bf16.mxu0 0
        %1358 = vmatpush1.bf16.xpose.msra.mxu0 0
        %1359 = vmatprep.subr.bf16.mxu0 0
        %1360 = vmatpush1.bf16.xpose.msra.mxu0 0
        %1361 = vmatprep.subr.bf16.mxu0 0
        %1362 = vmatpush1.bf16.xpose.msra.mxu0 0
        %1363 = vmatprep.subr.bf16.mxu0 0
        %1364 = vmatpush1.bf16.xpose.msra.mxu0 0
        %1365 = vmatprep.subr.bf16.mxu0 0
        %1366 = vmatpush1.bf16.xpose.msra.mxu0 0
        %1367 = vmatprep.subr.bf16.mxu0 0
        %1368 = vmatpush1.bf16.xpose.msra.mxu0 0
        %1369 = vmatprep.subr.bf16.mxu0 0
        %1370 = vmatpush1.bf16.xpose.msra.mxu0 0
        %1371 = vmatprep.subr.bf16.mxu0 0
        %1372 = vmatpush1.bf16.xpose.msra.mxu0 0
        %1373 = vmatprep.subr.bf16.mxu0 0
        %1374 = vmatpush1.bf16.xpose.msra.mxu0 0
        %1375 = vmatprep.subr.bf16.mxu0 0
        %1376 = vmatpush1.bf16.xpose.msra.mxu0 0
        %1377 = vmatprep.mubr.bf16.mxu0 0
        %1378 = vmatmul.mubr.bf16.gmra.mrb[0].mxu0 %v1340
        %v1379 = vpop.f32.mrb[0].mxu0
        %v1380 = vadd.f32 0.0, %v1379
        %v1381 = vpop.f32.mrb[0].mxu0
        %v1382 = vpop.f32.mrb[0].mxu0
        %v1383 = vpop.f32.mrb[0].mxu0
        %1384 = vdwg.mxu0
        %v1385 = vsel %vm418, %v1380, -inf
        %1386 = vmax.xlane.f32.xlu0 %v1385
        %v1387 = vpop.xlane.xlu0 %1386
        %v1388 = vsub.f32 %v1380, %v1387
        %v1389 = vmul.f32 %v1388, 1.442695
        %v1390 = vpow.pop %v1389
        %v1391 = vsel %vm418, %v1390, 0.0
        %1392 = vadd.xlane.f32.xlu0 %v1391
        %v1393 = vpop.xlane.xlu0 %1392
        %v1394 = vpack.c.bf16 %v1390, %v1390
        %v1396 = vsel %vm418, %v1394, 0
        %v1399 = vsel %vm478, %v1338, 0
        %1401 = vmatprep.subr.bf16.mxu0 0
        %1402 = vmatpush1.bf16.msra.mxu0 %v1399
        %1403 = vmatprep.subr.bf16.mxu0 0
        %1404 = vmatpush1.bf16.msra.mxu0 0
        %1405 = vmatprep.subr.bf16.mxu0 0
        %1406 = vmatpush1.bf16.msra.mxu0 0
        %1407 = vmatprep.subr.bf16.mxu0 0
        %1408 = vmatpush1.bf16.msra.mxu0 0
        %1409 = vmatprep.subr.bf16.mxu0 0
        %1410 = vmatpush1.bf16.msra.mxu0 0
        %1411 = vmatprep.subr.bf16.mxu0 0
        %1412 = vmatpush1.bf16.msra.mxu0 0
        %1413 = vmatprep.subr.bf16.mxu0 0
        %1414 = vmatpush1.bf16.msra.mxu0 0
        %1415 = vmatprep.subr.bf16.mxu0 0
        %1416 = vmatpush1.bf16.msra.mxu0 0
        %1417 = vmatprep.subr.bf16.mxu0 0
        %1418 = vmatpush1.bf16.msra.mxu0 0
        %1419 = vmatprep.subr.bf16.mxu0 0
        %1420 = vmatpush1.bf16.msra.mxu0 0
        %1421 = vmatprep.subr.bf16.mxu0 0
        %1422 = vmatpush1.bf16.msra.mxu0 0
        %1423 = vmatprep.subr.bf16.mxu0 0
        %1424 = vmatpush1.bf16.msra.mxu0 0
        %1425 = vmatprep.subr.bf16.mxu0 0
        %1426 = vmatpush1.bf16.msra.mxu0 0
        %1427 = vmatprep.subr.bf16.mxu0 0
        %1428 = vmatpush1.bf16.msra.mxu0 0
        %1429 = vmatprep.subr.bf16.mxu0 0
        %1430 = vmatpush1.bf16.msra.mxu0 0
        %1431 = vmatprep.subr.bf16.mxu0 0
        %1432 = vmatpush1.bf16.msra.mxu0 0
        %1433 = vmatprep.mubr.bf16.mxu0 0
        %1434 = vmatmul.mubr.bf16.gmra.mrb[0].mxu0 %v1396
        %v1435 = vpop.f32.mrb[0].mxu0
        %v1436 = vadd.f32 0.0, %v1435
        %v1437 = vpop.f32.mrb[0].mxu0
        %v1438 = vpop.f32.mrb[0].mxu0
        %v1439 = vpop.f32.mrb[0].mxu0
        %1440 = vdwg.mxu0
        %v1441 = vrcp.pop %v1393
        %v1442 = vmul.f32 %v1436, %v1441
        %1444 = vrot.lane.b32.xlu0 %v1442, 24
        %v1445 = vpop.permute.xlu0 %1444
        %vm1447 = vcmask 261312
        %1448 = vst.msk [vmem:[%s214] sm:$0xff] %vm1447, %v1445
        %s1449 = sand.u32 %s97, 1
        %s1450 = scalar_lea.sflag [#allocation4], %s1449
        %s1451 = sand.u32 %s97, 1
        %s1452 = smul.addr %s1451, 8
        %s1453 = scalar_lea.vmem [#allocation8], %s1452
        // Predicated region
        $region45: #{tpu_custom_call.1} parent=31 // pred_check
          %p1454 = pneg %p107
        $region46: #{tpu_custom_call.1} parent=31 // pred_check_branch
          %1456 = sbr.rel (%p1454) target = $region48
        $region47: #{tpu_custom_call.1} parent=31 // pred_region
          %s1458 = ssub.s32 128, 128
          %1459 = vsyncadd %s1450, %s1458
          %s1460 = smul.addr %s21, 128
          %s1461 = scalar_lea.hbm %s3, %s1460
          %s1463 = sshll.u32 %s1453, 4
          %s1464 = int_to_ptr.vmem [resolvable:$true] %s1463
          %1466 = dma.vmem_to_hbm [thread:$0]  %s1464, 128, %s1461, %s1450
        $region48: #{tpu_custom_call.1} parent=31 // pred_fallthru
          _
      $region32: #{tpu_custom_call.1} parent=5 // pred_fallthru
        _
      %p1467 = scmp.le.s32.totalorder 2, %s16
      // Predicated region
      $region49: #{tpu_custom_call.1} parent=5 // pred_check
        %p1468 = pneg %p1467
      $region50: #{tpu_custom_call.1} parent=5 // pred_check_branch
        %1470 = sbr.rel (%p1468) target = $region52
      $region51: #{tpu_custom_call.1} parent=5 // pred_region
        %s1471 = ssub.s32 %s16, 2
        // Predicated region
        $region53: #{tpu_custom_call.1} parent=51 // pred_check
          %p1472 = pneg %p113
        $region54: #{tpu_custom_call.1} parent=51 // pred_check_branch
          %1474 = sbr.rel (%p1472) target = $region56
        $region55: #{tpu_custom_call.1} parent=51 // pred_region
          %s1475 = sand.u32 %s98, 1
          %s1476 = scalar_lea.sflag [#allocation4], %s1475
          %s1477 = sand.u32 %s98, 1
          %s1478 = smul.addr %s1477, 8
          %s1479 = scalar_lea.vmem [#allocation8], %s1478
          %1480 = dma.done %s1476, 128
        $region56: #{tpu_custom_call.1} parent=51 // pred_fallthru
          _
      $region52: #{tpu_custom_call.1} parent=5 // pred_fallthru
        _
    $region6: #{tpu_custom_call.1} parent=1 // loop_footer
      %s20 = sadd.s32 1, %s16
    $region7: #{tpu_custom_call.1} parent=1 // loop_footer_branch
      %15 = sbr.rel target = $region3
    $region8: #{tpu_custom_call.1} parent=1 // loop_exit
      _
    %1481 = vsyncpa [#allocation3], 1
    %s1482 = scalar_lea.sflag [#allocation3], 1
    %1483 = vsyncpa %s1482, 1
    %1484 = vsyncpa [#allocation6], 1
    %1485 = vsyncpa [#allocation4], 1
    %s1486 = scalar_lea.sflag [#allocation4], 1
    %1487 = vsyncpa %s1486, 1

</llo_original>
